<compile_context>
chip_gen: v5e
topology: v5e:2x2
jax: 0.10.0
libtpu: 0.0.40
codegen_flags: <defaults>
</compile_context>

<pallas_src>
import jax
import jax.numpy as jnp
from jax import lax
from jax.experimental import pallas as pl
from jax.experimental.pallas import tpu as pltpu


# Geometry implied by the PyTorch module (28x28 single-channel input).
_H0, _W0 = 28, 28
_K = 5
_C1, _C2 = 6, 12
_H1, _W1 = _H0 - _K + 1, _W0 - _K + 1          # 24, 24  conv1 out
_H1P, _W1P = _H1 // 2, _W1 // 2                # 12, 12  pool1 out
_H2, _W2 = _H1P - _K + 1, _W1P - _K + 1        # 8, 8    conv2 out
_H2P, _W2P = _H2 // 2, _W2 // 2                # 4, 4    pool2 out
_F1, _F2, _F3 = 120, 60, 10


# ----------------------------------------------------------------------------
# Fused Pallas kernel (one grid step == one image)
# ----------------------------------------------------------------------------
def _lenet_fused_kernel(
    x_ref,                                  # (28, 28)       one image
    r1_ref, b1_ref,                         # (5, 28, 144), (1, 144)
    ph1e_ref, ph1o_ref,                     # (12, 24) each
    pw1e_ref, pw1o_ref,                     # (144, 72) each
    r2_ref, b2_ref,                         # (5, 72, 96), (1, 96)
    ph2e_ref, ph2o_ref,                     # (4, 8) each
    pw2e_ref, pw2o_ref,                     # (96, 48) each
    w1f_ref, b1f_ref,                       # (4, 48, 120), (1, 120)
    w2f_ref, b2f_ref,                       # (120, 60), (1, 60)
    w3f_ref, b3f_ref,                       # (60, 10), (1, 10)
    o_ref,                                  # (1, 10)
    p1_scr,                                 # VMEM (12, 72) scratch
    p2_scr,                                 # VMEM (4, 48) scratch
):
    f32 = jnp.float32

    # ---- conv1 (5x5, 1->6) + bias + ReLU -----------------------------------
    # Width conv is folded into the banded weight R1[kh]; accumulate over kh.
    y1 = jnp.dot(x_ref[0:_H1, :], r1_ref[0], preferred_element_type=f32)
    for kh in range(1, _K):
        y1 = y1 + jnp.dot(x_ref[kh:kh + _H1, :], r1_ref[kh],
                          preferred_element_type=f32)
    y1 = jnp.maximum(y1 + b1_ref[...], 0.0)                      # (24, 144)

    # ---- maxpool 2x2 stride 2 (exact 0/1 selection matmuls + max) ----------
    hp1 = jnp.maximum(
        jnp.dot(ph1e_ref[...], y1, preferred_element_type=f32),
        jnp.dot(ph1o_ref[...], y1, preferred_element_type=f32))  # (12, 144)
    p1 = jnp.maximum(
        jnp.dot(hp1, pw1e_ref[...], preferred_element_type=f32),
        jnp.dot(hp1, pw1o_ref[...], preferred_element_type=f32))  # (12, 72)
    p1_scr[...] = p1

    # ---- conv2 (5x5, 6->12) + bias + ReLU ----------------------------------
    y2 = jnp.dot(p1_scr[0:_H2, :], r2_ref[0], preferred_element_type=f32)
    for kh in range(1, _K):
        y2 = y2 + jnp.dot(p1_scr[kh:kh + _H2, :], r2_ref[kh],
                          preferred_element_type=f32)
    y2 = jnp.maximum(y2 + b2_ref[...], 0.0)                      # (8, 96)

    # ---- maxpool 2x2 stride 2 ----------------------------------------------
    hp2 = jnp.maximum(
        jnp.dot(ph2e_ref[...], y2, preferred_element_type=f32),
        jnp.dot(ph2o_ref[...], y2, preferred_element_type=f32))  # (4, 96)
    p2 = jnp.maximum(
        jnp.dot(hp2, pw2e_ref[...], preferred_element_type=f32),
        jnp.dot(hp2, pw2o_ref[...], preferred_element_type=f32))  # (4, 48)
    p2_scr[...] = p2

    # ---- flatten (PyTorch CHW order folded into fc1 blocks) + fc1/fc2/out --
    h = jnp.dot(p2_scr[0:1, :], w1f_ref[0], preferred_element_type=f32)
    for r in range(1, _H2P):
        h = h + jnp.dot(p2_scr[r:r + 1, :], w1f_ref[r],
                        preferred_element_type=f32)
    h = jnp.maximum(h + b1f_ref[...], 0.0)                       # (1, 120)
    h = jnp.maximum(
        jnp.dot(h, w2f_ref[...], preferred_element_type=f32) + b2f_ref[...],
        0.0)                                                     # (1, 60)
    o_ref[...] = (jnp.dot(h, w3f_ref[...], preferred_element_type=f32)
                  + b3f_ref[...])                                # (1, 10)


# ----------------------------------------------------------------------------
# One-time parameter re-layout (hoisted out of the per-forward path)
# ----------------------------------------------------------------------------
def _banded_conv_weight(w_oihw, w_out, w_in):
    """R[kh, w*Cin+ci, ow*Cout+co] = w[co, ci, kh, w-ow] if 0<=w-ow<K else 0."""
    cout, cin, k, _ = w_oihw.shape
    wk = jnp.transpose(w_oihw, (2, 3, 1, 0))          # (kh, kw, ci, co)
    ow = jnp.arange(w_out)
    j = jnp.arange(w_in)
    kwm = j[None, :] - ow[:, None]                    # (w_out, w_in)
    valid = (kwm >= 0) & (kwm < k)
    kwc = jnp.clip(kwm, 0, k - 1)
    r = wk[:, kwc, :, :]                              # (kh, w_out, w_in, ci, co)
    r = r * valid[None, :, :, None, None].astype(w_oihw.dtype)
    r = jnp.transpose(r, (0, 2, 3, 1, 4))             # (kh, w_in, ci, w_out, co)
    return r.reshape(k, w_in * cin, w_out * cout)


def _pool_row_select(h_out):
    rows = jnp.arange(h_out)[:, None]
    cols = jnp.arange(2 * h_out)[None, :]
    even = (cols == 2 * rows).astype(jnp.float32)
    odd = (cols == 2 * rows + 1).astype(jnp.float32)
    return even, odd                                  # (h_out, 2*h_out)


def _pool_col_select(w_out, ch):
    src = jnp.arange(2 * w_out * ch)
    dst = jnp.arange(w_out * ch)
    sw, sc = src // ch, src % ch
    dw, dc = dst // ch, dst % ch
    even = ((sw[:, None] == 2 * dw[None, :]) &
            (sc[:, None] == dc[None, :])).astype(jnp.float32)
    odd = ((sw[:, None] == 2 * dw[None, :] + 1) &
           (sc[:, None] == dc[None, :])).astype(jnp.float32)
    return even, odd                                  # (2*w_out*ch, w_out*ch)


def prepare_params(params):
    (cw1, cb1, cw2, cb2, fw1, fb1, fw2, fb2, fw3, fb3) = params
    f32 = jnp.float32

    r1 = _banded_conv_weight(cw1.astype(f32), _W1, _W0)              # (5,28,144)
    b1 = jnp.tile(cb1.astype(f32).reshape(1, 1, _C1),
                  (1, _W1, 1)).reshape(1, _W1 * _C1)                 # (1,144)
    r2 = _banded_conv_weight(cw2.astype(f32), _W2, _W1P)             # (5,72,96)
    b2 = jnp.tile(cb2.astype(f32).reshape(1, 1, _C2),
                  (1, _W2, 1)).reshape(1, _W2 * _C2)                 # (1,96)

    ph1e, ph1o = _pool_row_select(_H1P)                              # (12,24)
    pw1e, pw1o = _pool_col_select(_W1P, _C1)                         # (144,72)
    ph2e, ph2o = _pool_row_select(_H2P)                              # (4,8)
    pw2e, pw2o = _pool_col_select(_W2P, _C2)                         # (96,48)

    # fc1: fold PyTorch's flatten order (c*16 + h*4 + w) into per-row blocks
    # addressed by the kernel's lane order (w*12 + c).
    w1f = fw1.reshape(_F1, _C2, _H2P, _W2P)                          # (o,c,h,w)
    w1f = jnp.transpose(w1f, (2, 3, 1, 0))                           # (h,w,c,o)
    w1f = w1f.reshape(_H2P, _W2P * _C2, _F1).astype(f32)             # (4,48,120)

    b1f = fb1.reshape(1, _F1).astype(f32)
    w2f = fw2.T.astype(f32)
    b2f = fb2.reshape(1, _F2).astype(f32)
    w3f = fw3.T.astype(f32)
    b3f = fb3.reshape(1, _F3).astype(f32)

    return (r1, b1, ph1e, ph1o, pw1e, pw1o,
            r2, b2, ph2e, ph2o, pw2e, pw2o,
            w1f, b1f, w2f, b2f, w3f, b3f)


# ----------------------------------------------------------------------------
# Forward pass (one fused pallas_call; grid = batch)
# ----------------------------------------------------------------------------
def _const_spec(shape):
    return pl.BlockSpec(shape, lambda i, _nd=len(shape): (0,) * _nd)


@jax.jit
def network_forward(x_nchw, prep):
    (r1, b1, ph1e, ph1o, pw1e, pw1o,
     r2, b2, ph2e, ph2o, pw2e, pw2o,
     w1f, b1f, w2f, b2f, w3f, b3f) = prep

    n = x_nchw.shape[0]
    x = x_nchw.reshape(n, _H0, _W0).astype(jnp.float32)      # Cin == 1

    out = pl.pallas_call(
        _lenet_fused_kernel,
        out_shape=jax.ShapeDtypeStruct((n, 1, _F3), jnp.float32),
        grid=(n,),
        in_specs=[
            pl.BlockSpec((None, _H0, _W0), lambda i: (i, 0, 0)),
            _const_spec(r1.shape), _const_spec(b1.shape),
            _const_spec(ph1e.shape), _const_spec(ph1o.shape),
            _const_spec(pw1e.shape), _const_spec(pw1o.shape),
            _const_spec(r2.shape), _const_spec(b2.shape),
            _const_spec(ph2e.shape), _const_spec(ph2o.shape),
            _const_spec(pw2e.shape), _const_spec(pw2o.shape),
            _const_spec(w1f.shape), _const_spec(b1f.shape),
            _const_spec(w2f.shape), _const_spec(b2f.shape),
            _const_spec(w3f.shape), _const_spec(b3f.shape),
        ],
        out_specs=pl.BlockSpec((None, 1, _F3), lambda i: (i, 0, 0)),
        scratch_shapes=[
            pltpu.VMEM((_H1P, _W1P * _C1), jnp.float32),
            pltpu.VMEM((_H2P, _W2P * _C2), jnp.float32),
        ],
        compiler_params=pltpu.CompilerParams(
            dimension_semantics=("parallel",)),
    )(x, r1, b1, ph1e, ph1o, pw1e, pw1o,
      r2, b2, ph2e, ph2o, pw2e, pw2o,
      w1f, b1f, w2f, b2f, w3f, b3f)

    return out.reshape(n, _F3)


# ----------------------------------------------------------------------------
# Pure-JAX reference (silent correctness check)
# ----------------------------------------------------------------------------
def reference_forward(x_nchw, params):
    (cw1, cb1, cw2, cb2, fw1, fb1, fw2, fb2, fw3, fb3) = params
    dn = ("NCHW", "OIHW", "NCHW")

    def pool(t):
        nb, c, h, w = t.shape
        return t.reshape(nb, c, h // 2, 2, w // 2, 2).max(axis=(3, 5))

    t = lax.conv_general_dilated(x_nchw, cw1, (1, 1), "VALID",
                                 dimension_numbers=dn) + cb1.reshape(1, -1, 1, 1)
    t = pool(jnp.maximum(t, 0.0))
    t = lax.conv_general_dilated(t, cw2, (1, 1), "VALID",
                                 dimension_numbers=dn) + cb2.reshape(1, -1, 1, 1)
    t = pool(jnp.maximum(t, 0.0))
    t = t.reshape(t.shape[0], -1)
    t = jnp.maximum(t @ fw1.T + fb1, 0.0)
    t = jnp.maximum(t @ fw2.T + fb2, 0.0)
    return t @ fw3.T + fb3


# ----------------------------------------------------------------------------
# Deterministic parameter init (PyTorch-default-style uniform(-1/sqrt(fan_in)))
# ----------------------------------------------------------------------------
def init_params(key):
    def uniform(k, shape, fan_in):
        bound = 1.0 / jnp.sqrt(float(fan_in))
        return jax.random.uniform(k, shape, jnp.float32, -bound, bound)

    ks = jax.random.split(key, 10)
    cw1 = uniform(ks[0], (6, 1, 5, 5), 1 * 5 * 5)
    cb1 = uniform(ks[1], (6,), 1 * 5 * 5)
    cw2 = uniform(ks[2], (12, 6, 5, 5), 6 * 5 * 5)
    cb2 = uniform(ks[3], (12,), 6 * 5 * 5)
    fw1 = uniform(ks[4], (120, 192), 192)
    fb1 = uniform(ks[5], (120,), 192)
    fw2 = uniform(ks[6], (60, 120), 120)
    fb2 = uniform(ks[7], (60,), 120)
    fw3 = uniform(ks[8], (10, 60), 60)
    fb3 = uniform(ks[9], (10,), 60)
    return (cw1, cb1, cw2, cb2, fw1, fb1, fw2, fb2, fw3, fb3)


if __name__ == "__main__":
    key = jax.random.PRNGKey(0)
    k_param, k_x = jax.random.split(key)
    params = init_params(k_param)
    prep = prepare_params(params)          # one-time weight re-layout
    # Network implies 28x28 single-channel input; batch=2.
    x = jax.random.normal(k_x, (2, 1, 28, 28), jnp.float32)

    out = network_forward(x, prep)
    out = jax.block_until_ready(out)

    ref = reference_forward(x, params)
    assert out.shape == (2, 10)
    assert jnp.allclose(out, ref, atol=5e-4, rtol=5e-4), float(
        jnp.max(jnp.abs(out - ref)))
    print("KERNEL_OK")
</pallas_src>

<mosaic_0001>
module attributes {stable_mosaic.version = 11 : i64} {
  func.func @_lenet_fused_kernel(%arg0: i32, %arg1: memref<1x28x28xf32, #tpu.memory_space<vmem>>, %arg2: memref<5x28x144xf32, #tpu.memory_space<vmem>>, %arg3: memref<1x144xf32, #tpu.memory_space<vmem>>, %arg4: memref<12x24xf32, #tpu.memory_space<vmem>>, %arg5: memref<12x24xf32, #tpu.memory_space<vmem>>, %arg6: memref<144x72xf32, #tpu.memory_space<vmem>>, %arg7: memref<144x72xf32, #tpu.memory_space<vmem>>, %arg8: memref<5x72x96xf32, #tpu.memory_space<vmem>>, %arg9: memref<1x96xf32, #tpu.memory_space<vmem>>, %arg10: memref<4x8xf32, #tpu.memory_space<vmem>>, %arg11: memref<4x8xf32, #tpu.memory_space<vmem>>, %arg12: memref<96x48xf32, #tpu.memory_space<vmem>>, %arg13: memref<96x48xf32, #tpu.memory_space<vmem>>, %arg14: memref<4x48x120xf32, #tpu.memory_space<vmem>>, %arg15: memref<1x120xf32, #tpu.memory_space<vmem>>, %arg16: memref<120x60xf32, #tpu.memory_space<vmem>>, %arg17: memref<1x60xf32, #tpu.memory_space<vmem>>, %arg18: memref<60x10xf32, #tpu.memory_space<vmem>>, %arg19: memref<1x10xf32, #tpu.memory_space<vmem>>, %arg20: memref<1x1x10xf32, #tpu.memory_space<vmem>>, %arg21: memref<12x72xf32, #tpu.memory_space<vmem>>, %arg22: memref<4x48xf32, #tpu.memory_space<vmem>>) attributes {dimension_semantics = [#tpu.dimension_semantics<parallel>], iteration_bounds = array<i64: 2>, scalar_prefetch = 0 : i64, scratch_operands = 2 : i64, tpu.core_type = #tpu.core_type<tc>, window_params = [{transform_indices = @transform_0, window_bounds = array<i64: 1, 28, 28>}, {pipeline_mode = #tpu.pipeline_mode<synchronous>, transform_indices = @transform_1, window_bounds = array<i64: 5, 28, 144>}, {pipeline_mode = #tpu.pipeline_mode<synchronous>, transform_indices = @transform_2, window_bounds = array<i64: 1, 144>}, {pipeline_mode = #tpu.pipeline_mode<synchronous>, transform_indices = @transform_3, window_bounds = array<i64: 12, 24>}, {pipeline_mode = #tpu.pipeline_mode<synchronous>, transform_indices = @transform_4, window_bounds = array<i64: 12, 24>}, {pipeline_mode = #tpu.pipeline_mode<synchronous>, transform_indices = @transform_5, window_bounds = array<i64: 144, 72>}, {pipeline_mode = #tpu.pipeline_mode<synchronous>, transform_indices = @transform_6, window_bounds = array<i64: 144, 72>}, {pipeline_mode = #tpu.pipeline_mode<synchronous>, transform_indices = @transform_7, window_bounds = array<i64: 5, 72, 96>}, {pipeline_mode = #tpu.pipeline_mode<synchronous>, transform_indices = @transform_8, window_bounds = array<i64: 1, 96>}, {pipeline_mode = #tpu.pipeline_mode<synchronous>, transform_indices = @transform_9, window_bounds = array<i64: 4, 8>}, {pipeline_mode = #tpu.pipeline_mode<synchronous>, transform_indices = @transform_10, window_bounds = array<i64: 4, 8>}, {pipeline_mode = #tpu.pipeline_mode<synchronous>, transform_indices = @transform_11, window_bounds = array<i64: 96, 48>}, {pipeline_mode = #tpu.pipeline_mode<synchronous>, transform_indices = @transform_12, window_bounds = array<i64: 96, 48>}, {pipeline_mode = #tpu.pipeline_mode<synchronous>, transform_indices = @transform_13, window_bounds = array<i64: 4, 48, 120>}, {pipeline_mode = #tpu.pipeline_mode<synchronous>, transform_indices = @transform_14, window_bounds = array<i64: 1, 120>}, {pipeline_mode = #tpu.pipeline_mode<synchronous>, transform_indices = @transform_15, window_bounds = array<i64: 120, 60>}, {pipeline_mode = #tpu.pipeline_mode<synchronous>, transform_indices = @transform_16, window_bounds = array<i64: 1, 60>}, {pipeline_mode = #tpu.pipeline_mode<synchronous>, transform_indices = @transform_17, window_bounds = array<i64: 60, 10>}, {pipeline_mode = #tpu.pipeline_mode<synchronous>, transform_indices = @transform_18, window_bounds = array<i64: 1, 10>}, {transform_indices = @transform_19, window_bounds = array<i64: 1, 1, 10>}]} {
    %c0 = arith.constant 0 : index
    %c0_0 = arith.constant 0 : index
    %c0_1 = arith.constant 0 : index
    %0 = vector.load %arg1[%c0, %c0_0, %c0_1] : memref<1x28x28xf32, #tpu.memory_space<vmem>>, vector<1x24x28xf32>
    %1 = vector.shape_cast %0 : vector<1x24x28xf32> to vector<24x28xf32>
    %c0_2 = arith.constant 0 : index
    %c0_3 = arith.constant 0 : index
    %c0_4 = arith.constant 0 : index
    %2 = vector.load %arg2[%c0_2, %c0_3, %c0_4] : memref<5x28x144xf32, #tpu.memory_space<vmem>>, vector<1x28x144xf32>
    %3 = vector.shape_cast %2 : vector<1x28x144xf32> to vector<28x144xf32>
    %cst = arith.constant dense<0.000000e+00> : vector<24x144xf32>
    %4 = tpu.matmul %1, %3, %cst {dimension_numbers = #tpu.dot_dimension_numbers<[1], [0], [0], [1], [0, 0, 1, 1], [], []>} : vector<24x28xf32>, vector<28x144xf32>, vector<24x144xf32> -> vector<24x144xf32>
    %c0_5 = arith.constant 0 : index
    %c1 = arith.constant 1 : index
    %c0_6 = arith.constant 0 : index
    %5 = vector.load %arg1[%c0_5, %c1, %c0_6] : memref<1x28x28xf32, #tpu.memory_space<vmem>>, vector<1x24x28xf32>
    %6 = vector.shape_cast %5 : vector<1x24x28xf32> to vector<24x28xf32>
    %c1_7 = arith.constant 1 : index
    %c0_8 = arith.constant 0 : index
    %c0_9 = arith.constant 0 : index
    %7 = vector.load %arg2[%c1_7, %c0_8, %c0_9] : memref<5x28x144xf32, #tpu.memory_space<vmem>>, vector<1x28x144xf32>
    %8 = vector.shape_cast %7 : vector<1x28x144xf32> to vector<28x144xf32>
    %cst_10 = arith.constant dense<0.000000e+00> : vector<24x144xf32>
    %9 = tpu.matmul %6, %8, %cst_10 {dimension_numbers = #tpu.dot_dimension_numbers<[1], [0], [0], [1], [0, 0, 1, 1], [], []>} : vector<24x28xf32>, vector<28x144xf32>, vector<24x144xf32> -> vector<24x144xf32>
    %10 = arith.addf %4, %9 : vector<24x144xf32>
    %c0_11 = arith.constant 0 : index
    %c2 = arith.constant 2 : index
    %c0_12 = arith.constant 0 : index
    %11 = vector.load %arg1[%c0_11, %c2, %c0_12] : memref<1x28x28xf32, #tpu.memory_space<vmem>>, vector<1x24x28xf32>
    %12 = vector.shape_cast %11 : vector<1x24x28xf32> to vector<24x28xf32>
    %c2_13 = arith.constant 2 : index
    %c0_14 = arith.constant 0 : index
    %c0_15 = arith.constant 0 : index
    %13 = vector.load %arg2[%c2_13, %c0_14, %c0_15] : memref<5x28x144xf32, #tpu.memory_space<vmem>>, vector<1x28x144xf32>
    %14 = vector.shape_cast %13 : vector<1x28x144xf32> to vector<28x144xf32>
    %cst_16 = arith.constant dense<0.000000e+00> : vector<24x144xf32>
    %15 = tpu.matmul %12, %14, %cst_16 {dimension_numbers = #tpu.dot_dimension_numbers<[1], [0], [0], [1], [0, 0, 1, 1], [], []>} : vector<24x28xf32>, vector<28x144xf32>, vector<24x144xf32> -> vector<24x144xf32>
    %16 = arith.addf %10, %15 : vector<24x144xf32>
    %c0_17 = arith.constant 0 : index
    %c3 = arith.constant 3 : index
    %c0_18 = arith.constant 0 : index
    %17 = vector.load %arg1[%c0_17, %c3, %c0_18] : memref<1x28x28xf32, #tpu.memory_space<vmem>>, vector<1x24x28xf32>
    %18 = vector.shape_cast %17 : vector<1x24x28xf32> to vector<24x28xf32>
    %c3_19 = arith.constant 3 : index
    %c0_20 = arith.constant 0 : index
    %c0_21 = arith.constant 0 : index
    %19 = vector.load %arg2[%c3_19, %c0_20, %c0_21] : memref<5x28x144xf32, #tpu.memory_space<vmem>>, vector<1x28x144xf32>
    %20 = vector.shape_cast %19 : vector<1x28x144xf32> to vector<28x144xf32>
    %cst_22 = arith.constant dense<0.000000e+00> : vector<24x144xf32>
    %21 = tpu.matmul %18, %20, %cst_22 {dimension_numbers = #tpu.dot_dimension_numbers<[1], [0], [0], [1], [0, 0, 1, 1], [], []>} : vector<24x28xf32>, vector<28x144xf32>, vector<24x144xf32> -> vector<24x144xf32>
    %22 = arith.addf %16, %21 : vector<24x144xf32>
    %c0_23 = arith.constant 0 : index
    %c4 = arith.constant 4 : index
    %c0_24 = arith.constant 0 : index
    %23 = vector.load %arg1[%c0_23, %c4, %c0_24] : memref<1x28x28xf32, #tpu.memory_space<vmem>>, vector<1x24x28xf32>
    %24 = vector.shape_cast %23 : vector<1x24x28xf32> to vector<24x28xf32>
    %c4_25 = arith.constant 4 : index
    %c0_26 = arith.constant 0 : index
    %c0_27 = arith.constant 0 : index
    %25 = vector.load %arg2[%c4_25, %c0_26, %c0_27] : memref<5x28x144xf32, #tpu.memory_space<vmem>>, vector<1x28x144xf32>
    %26 = vector.shape_cast %25 : vector<1x28x144xf32> to vector<28x144xf32>
    %cst_28 = arith.constant dense<0.000000e+00> : vector<24x144xf32>
    %27 = tpu.matmul %24, %26, %cst_28 {dimension_numbers = #tpu.dot_dimension_numbers<[1], [0], [0], [1], [0, 0, 1, 1], [], []>} : vector<24x28xf32>, vector<28x144xf32>, vector<24x144xf32> -> vector<24x144xf32>
    %28 = arith.addf %22, %27 : vector<24x144xf32>
    %c0_29 = arith.constant 0 : index
    %c0_30 = arith.constant 0 : index
    %29 = vector.load %arg3[%c0_29, %c0_30] : memref<1x144xf32, #tpu.memory_space<vmem>>, vector<1x144xf32>
    %30 = vector.broadcast %29 : vector<1x144xf32> to vector<24x144xf32>
    %31 = arith.addf %28, %30 : vector<24x144xf32>
    %cst_31 = arith.constant 0.000000e+00 : f32
    %32 = vector.broadcast %cst_31 : f32 to vector<24x144xf32>
    %33 = arith.maximumf %31, %32 : vector<24x144xf32>
    %c0_32 = arith.constant 0 : index
    %c0_33 = arith.constant 0 : index
    %34 = vector.load %arg4[%c0_32, %c0_33] : memref<12x24xf32, #tpu.memory_space<vmem>>, vector<12x24xf32>
    %cst_34 = arith.constant dense<0.000000e+00> : vector<12x144xf32>
    %35 = tpu.matmul %34, %33, %cst_34 {dimension_numbers = #tpu.dot_dimension_numbers<[1], [0], [0], [1], [0, 0, 1, 1], [], []>} : vector<12x24xf32>, vector<24x144xf32>, vector<12x144xf32> -> vector<12x144xf32>
    %c0_35 = arith.constant 0 : index
    %c0_36 = arith.constant 0 : index
    %36 = vector.load %arg5[%c0_35, %c0_36] : memref<12x24xf32, #tpu.memory_space<vmem>>, vector<12x24xf32>
    %cst_37 = arith.constant dense<0.000000e+00> : vector<12x144xf32>
    %37 = tpu.matmul %36, %33, %cst_37 {dimension_numbers = #tpu.dot_dimension_numbers<[1], [0], [0], [1], [0, 0, 1, 1], [], []>} : vector<12x24xf32>, vector<24x144xf32>, vector<12x144xf32> -> vector<12x144xf32>
    %38 = arith.maximumf %35, %37 : vector<12x144xf32>
    %c0_38 = arith.constant 0 : index
    %c0_39 = arith.constant 0 : index
    %39 = vector.load %arg6[%c0_38, %c0_39] : memref<144x72xf32, #tpu.memory_space<vmem>>, vector<144x72xf32>
    %cst_40 = arith.constant dense<0.000000e+00> : vector<12x72xf32>
    %40 = tpu.matmul %38, %39, %cst_40 {dimension_numbers = #tpu.dot_dimension_numbers<[1], [0], [0], [1], [0, 0, 1, 1], [], []>} : vector<12x144xf32>, vector<144x72xf32>, vector<12x72xf32> -> vector<12x72xf32>
    %c0_41 = arith.constant 0 : index
    %c0_42 = arith.constant 0 : index
    %41 = vector.load %arg7[%c0_41, %c0_42] : memref<144x72xf32, #tpu.memory_space<vmem>>, vector<144x72xf32>
    %cst_43 = arith.constant dense<0.000000e+00> : vector<12x72xf32>
    %42 = tpu.matmul %38, %41, %cst_43 {dimension_numbers = #tpu.dot_dimension_numbers<[1], [0], [0], [1], [0, 0, 1, 1], [], []>} : vector<12x144xf32>, vector<144x72xf32>, vector<12x72xf32> -> vector<12x72xf32>
    %43 = arith.maximumf %40, %42 : vector<12x72xf32>
    %c0_44 = arith.constant 0 : index
    %c0_45 = arith.constant 0 : index
    %44 = vector.load %arg21[%c0_44, %c0_45] : memref<12x72xf32, #tpu.memory_space<vmem>>, vector<12x72xf32>
    tpu.vector_store %arg21[%c0_44, %c0_45], %43 {strides = array<i32>} : memref<12x72xf32, #tpu.memory_space<vmem>>, vector<12x72xf32>,
    %c0_46 = arith.constant 0 : index
    %c0_47 = arith.constant 0 : index
    %45 = vector.load %arg21[%c0_46, %c0_47] : memref<12x72xf32, #tpu.memory_space<vmem>>, vector<8x72xf32>
    %c0_48 = arith.constant 0 : index
    %c0_49 = arith.constant 0 : index
    %c0_50 = arith.constant 0 : index
    %46 = vector.load %arg8[%c0_48, %c0_49, %c0_50] : memref<5x72x96xf32, #tpu.memory_space<vmem>>, vector<1x72x96xf32>
    %47 = vector.shape_cast %46 : vector<1x72x96xf32> to vector<72x96xf32>
    %cst_51 = arith.constant dense<0.000000e+00> : vector<8x96xf32>
    %48 = tpu.matmul %45, %47, %cst_51 {dimension_numbers = #tpu.dot_dimension_numbers<[1], [0], [0], [1], [0, 0, 1, 1], [], []>} : vector<8x72xf32>, vector<72x96xf32>, vector<8x96xf32> -> vector<8x96xf32>
    %c1_52 = arith.constant 1 : index
    %c0_53 = arith.constant 0 : index
    %49 = vector.load %arg21[%c1_52, %c0_53] : memref<12x72xf32, #tpu.memory_space<vmem>>, vector<8x72xf32>
    %c1_54 = arith.constant 1 : index
    %c0_55 = arith.constant 0 : index
    %c0_56 = arith.constant 0 : index
    %50 = vector.load %arg8[%c1_54, %c0_55, %c0_56] : memref<5x72x96xf32, #tpu.memory_space<vmem>>, vector<1x72x96xf32>
    %51 = vector.shape_cast %50 : vector<1x72x96xf32> to vector<72x96xf32>
    %cst_57 = arith.constant dense<0.000000e+00> : vector<8x96xf32>
    %52 = tpu.matmul %49, %51, %cst_57 {dimension_numbers = #tpu.dot_dimension_numbers<[1], [0], [0], [1], [0, 0, 1, 1], [], []>} : vector<8x72xf32>, vector<72x96xf32>, vector<8x96xf32> -> vector<8x96xf32>
    %53 = arith.addf %48, %52 : vector<8x96xf32>
    %c2_58 = arith.constant 2 : index
    %c0_59 = arith.constant 0 : index
    %54 = vector.load %arg21[%c2_58, %c0_59] : memref<12x72xf32, #tpu.memory_space<vmem>>, vector<8x72xf32>
    %c2_60 = arith.constant 2 : index
    %c0_61 = arith.constant 0 : index
    %c0_62 = arith.constant 0 : index
    %55 = vector.load %arg8[%c2_60, %c0_61, %c0_62] : memref<5x72x96xf32, #tpu.memory_space<vmem>>, vector<1x72x96xf32>
    %56 = vector.shape_cast %55 : vector<1x72x96xf32> to vector<72x96xf32>
    %cst_63 = arith.constant dense<0.000000e+00> : vector<8x96xf32>
    %57 = tpu.matmul %54, %56, %cst_63 {dimension_numbers = #tpu.dot_dimension_numbers<[1], [0], [0], [1], [0, 0, 1, 1], [], []>} : vector<8x72xf32>, vector<72x96xf32>, vector<8x96xf32> -> vector<8x96xf32>
    %58 = arith.addf %53, %57 : vector<8x96xf32>
    %c3_64 = arith.constant 3 : index
    %c0_65 = arith.constant 0 : index
    %59 = vector.load %arg21[%c3_64, %c0_65] : memref<12x72xf32, #tpu.memory_space<vmem>>, vector<8x72xf32>
    %c3_66 = arith.constant 3 : index
    %c0_67 = arith.constant 0 : index
    %c0_68 = arith.constant 0 : index
    %60 = vector.load %arg8[%c3_66, %c0_67, %c0_68] : memref<5x72x96xf32, #tpu.memory_space<vmem>>, vector<1x72x96xf32>
    %61 = vector.shape_cast %60 : vector<1x72x96xf32> to vector<72x96xf32>
    %cst_69 = arith.constant dense<0.000000e+00> : vector<8x96xf32>
    %62 = tpu.matmul %59, %61, %cst_69 {dimension_numbers = #tpu.dot_dimension_numbers<[1], [0], [0], [1], [0, 0, 1, 1], [], []>} : vector<8x72xf32>, vector<72x96xf32>, vector<8x96xf32> -> vector<8x96xf32>
    %63 = arith.addf %58, %62 : vector<8x96xf32>
    %c4_70 = arith.constant 4 : index
    %c0_71 = arith.constant 0 : index
    %64 = vector.load %arg21[%c4_70, %c0_71] : memref<12x72xf32, #tpu.memory_space<vmem>>, vector<8x72xf32>
    %c4_72 = arith.constant 4 : index
    %c0_73 = arith.constant 0 : index
    %c0_74 = arith.constant 0 : index
    %65 = vector.load %arg8[%c4_72, %c0_73, %c0_74] : memref<5x72x96xf32, #tpu.memory_space<vmem>>, vector<1x72x96xf32>
    %66 = vector.shape_cast %65 : vector<1x72x96xf32> to vector<72x96xf32>
    %cst_75 = arith.constant dense<0.000000e+00> : vector<8x96xf32>
    %67 = tpu.matmul %64, %66, %cst_75 {dimension_numbers = #tpu.dot_dimension_numbers<[1], [0], [0], [1], [0, 0, 1, 1], [], []>} : vector<8x72xf32>, vector<72x96xf32>, vector<8x96xf32> -> vector<8x96xf32>
    %68 = arith.addf %63, %67 : vector<8x96xf32>
    %c0_76 = arith.constant 0 : index
    %c0_77 = arith.constant 0 : index
    %69 = vector.load %arg9[%c0_76, %c0_77] : memref<1x96xf32, #tpu.memory_space<vmem>>, vector<1x96xf32>
    %70 = vector.broadcast %69 : vector<1x96xf32> to vector<8x96xf32>
    %71 = arith.addf %68, %70 : vector<8x96xf32>
    %cst_78 = arith.constant 0.000000e+00 : f32
    %72 = vector.broadcast %cst_78 : f32 to vector<8x96xf32>
    %73 = arith.maximumf %71, %72 : vector<8x96xf32>
    %c0_79 = arith.constant 0 : index
    %c0_80 = arith.constant 0 : index
    %74 = vector.load %arg10[%c0_79, %c0_80] : memref<4x8xf32, #tpu.memory_space<vmem>>, vector<4x8xf32>
    %cst_81 = arith.constant dense<0.000000e+00> : vector<4x96xf32>
    %75 = tpu.matmul %74, %73, %cst_81 {dimension_numbers = #tpu.dot_dimension_numbers<[1], [0], [0], [1], [0, 0, 1, 1], [], []>} : vector<4x8xf32>, vector<8x96xf32>, vector<4x96xf32> -> vector<4x96xf32>
    %c0_82 = arith.constant 0 : index
    %c0_83 = arith.constant 0 : index
    %76 = vector.load %arg11[%c0_82, %c0_83] : memref<4x8xf32, #tpu.memory_space<vmem>>, vector<4x8xf32>
    %cst_84 = arith.constant dense<0.000000e+00> : vector<4x96xf32>
    %77 = tpu.matmul %76, %73, %cst_84 {dimension_numbers = #tpu.dot_dimension_numbers<[1], [0], [0], [1], [0, 0, 1, 1], [], []>} : vector<4x8xf32>, vector<8x96xf32>, vector<4x96xf32> -> vector<4x96xf32>
    %78 = arith.maximumf %75, %77 : vector<4x96xf32>
    %c0_85 = arith.constant 0 : index
    %c0_86 = arith.constant 0 : index
    %79 = vector.load %arg12[%c0_85, %c0_86] : memref<96x48xf32, #tpu.memory_space<vmem>>, vector<96x48xf32>
    %cst_87 = arith.constant dense<0.000000e+00> : vector<4x48xf32>
    %80 = tpu.matmul %78, %79, %cst_87 {dimension_numbers = #tpu.dot_dimension_numbers<[1], [0], [0], [1], [0, 0, 1, 1], [], []>} : vector<4x96xf32>, vector<96x48xf32>, vector<4x48xf32> -> vector<4x48xf32>
    %c0_88 = arith.constant 0 : index
    %c0_89 = arith.constant 0 : index
    %81 = vector.load %arg13[%c0_88, %c0_89] : memref<96x48xf32, #tpu.memory_space<vmem>>, vector<96x48xf32>
    %cst_90 = arith.constant dense<0.000000e+00> : vector<4x48xf32>
    %82 = tpu.matmul %78, %81, %cst_90 {dimension_numbers = #tpu.dot_dimension_numbers<[1], [0], [0], [1], [0, 0, 1, 1], [], []>} : vector<4x96xf32>, vector<96x48xf32>, vector<4x48xf32> -> vector<4x48xf32>
    %83 = arith.maximumf %80, %82 : vector<4x48xf32>
    %c0_91 = arith.constant 0 : index
    %c0_92 = arith.constant 0 : index
    %84 = vector.load %arg22[%c0_91, %c0_92] : memref<4x48xf32, #tpu.memory_space<vmem>>, vector<4x48xf32>
    tpu.vector_store %arg22[%c0_91, %c0_92], %83 {strides = array<i32>} : memref<4x48xf32, #tpu.memory_space<vmem>>, vector<4x48xf32>,
    %c0_93 = arith.constant 0 : index
    %c0_94 = arith.constant 0 : index
    %85 = vector.load %arg22[%c0_93, %c0_94] : memref<4x48xf32, #tpu.memory_space<vmem>>, vector<1x48xf32>
    %c0_95 = arith.constant 0 : index
    %c0_96 = arith.constant 0 : index
    %c0_97 = arith.constant 0 : index
    %86 = vector.load %arg14[%c0_95, %c0_96, %c0_97] : memref<4x48x120xf32, #tpu.memory_space<vmem>>, vector<1x48x120xf32>
    %87 = vector.shape_cast %86 : vector<1x48x120xf32> to vector<48x120xf32>
    %cst_98 = arith.constant dense<0.000000e+00> : vector<1x120xf32>
    %88 = tpu.matmul %85, %87, %cst_98 {dimension_numbers = #tpu.dot_dimension_numbers<[1], [0], [0], [1], [0, 0, 1, 1], [], []>} : vector<1x48xf32>, vector<48x120xf32>, vector<1x120xf32> -> vector<1x120xf32>
    %c1_99 = arith.constant 1 : index
    %c0_100 = arith.constant 0 : index
    %89 = vector.load %arg22[%c1_99, %c0_100] : memref<4x48xf32, #tpu.memory_space<vmem>>, vector<1x48xf32>
    %c1_101 = arith.constant 1 : index
    %c0_102 = arith.constant 0 : index
    %c0_103 = arith.constant 0 : index
    %90 = vector.load %arg14[%c1_101, %c0_102, %c0_103] : memref<4x48x120xf32, #tpu.memory_space<vmem>>, vector<1x48x120xf32>
    %91 = vector.shape_cast %90 : vector<1x48x120xf32> to vector<48x120xf32>
    %cst_104 = arith.constant dense<0.000000e+00> : vector<1x120xf32>
    %92 = tpu.matmul %89, %91, %cst_104 {dimension_numbers = #tpu.dot_dimension_numbers<[1], [0], [0], [1], [0, 0, 1, 1], [], []>} : vector<1x48xf32>, vector<48x120xf32>, vector<1x120xf32> -> vector<1x120xf32>
    %93 = arith.addf %88, %92 : vector<1x120xf32>
    %c2_105 = arith.constant 2 : index
    %c0_106 = arith.constant 0 : index
    %94 = vector.load %arg22[%c2_105, %c0_106] : memref<4x48xf32, #tpu.memory_space<vmem>>, vector<1x48xf32>
    %c2_107 = arith.constant 2 : index
    %c0_108 = arith.constant 0 : index
    %c0_109 = arith.constant 0 : index
    %95 = vector.load %arg14[%c2_107, %c0_108, %c0_109] : memref<4x48x120xf32, #tpu.memory_space<vmem>>, vector<1x48x120xf32>
    %96 = vector.shape_cast %95 : vector<1x48x120xf32> to vector<48x120xf32>
    %cst_110 = arith.constant dense<0.000000e+00> : vector<1x120xf32>
    %97 = tpu.matmul %94, %96, %cst_110 {dimension_numbers = #tpu.dot_dimension_numbers<[1], [0], [0], [1], [0, 0, 1, 1], [], []>} : vector<1x48xf32>, vector<48x120xf32>, vector<1x120xf32> -> vector<1x120xf32>
    %98 = arith.addf %93, %97 : vector<1x120xf32>
    %c3_111 = arith.constant 3 : index
    %c0_112 = arith.constant 0 : index
    %99 = vector.load %arg22[%c3_111, %c0_112] : memref<4x48xf32, #tpu.memory_space<vmem>>, vector<1x48xf32>
    %c3_113 = arith.constant 3 : index
    %c0_114 = arith.constant 0 : index
    %c0_115 = arith.constant 0 : index
    %100 = vector.load %arg14[%c3_113, %c0_114, %c0_115] : memref<4x48x120xf32, #tpu.memory_space<vmem>>, vector<1x48x120xf32>
    %101 = vector.shape_cast %100 : vector<1x48x120xf32> to vector<48x120xf32>
    %cst_116 = arith.constant dense<0.000000e+00> : vector<1x120xf32>
    %102 = tpu.matmul %99, %101, %cst_116 {dimension_numbers = #tpu.dot_dimension_numbers<[1], [0], [0], [1], [0, 0, 1, 1], [], []>} : vector<1x48xf32>, vector<48x120xf32>, vector<1x120xf32> -> vector<1x120xf32>
    %103 = arith.addf %98, %102 : vector<1x120xf32>
    %c0_117 = arith.constant 0 : index
    %c0_118 = arith.constant 0 : index
    %104 = vector.load %arg15[%c0_117, %c0_118] : memref<1x120xf32, #tpu.memory_space<vmem>>, vector<1x120xf32>
    %105 = arith.addf %103, %104 : vector<1x120xf32>
    %cst_119 = arith.constant 0.000000e+00 : f32
    %106 = vector.broadcast %cst_119 : f32 to vector<1x120xf32>
    %107 = arith.maximumf %105, %106 : vector<1x120xf32>
    %c0_120 = arith.constant 0 : index
    %c0_121 = arith.constant 0 : index
    %108 = vector.load %arg16[%c0_120, %c0_121] : memref<120x60xf32, #tpu.memory_space<vmem>>, vector<120x60xf32>
    %cst_122 = arith.constant dense<0.000000e+00> : vector<1x60xf32>
    %109 = tpu.matmul %107, %108, %cst_122 {dimension_numbers = #tpu.dot_dimension_numbers<[1], [0], [0], [1], [0, 0, 1, 1], [], []>} : vector<1x120xf32>, vector<120x60xf32>, vector<1x60xf32> -> vector<1x60xf32>
    %c0_123 = arith.constant 0 : index
    %c0_124 = arith.constant 0 : index
    %110 = vector.load %arg17[%c0_123, %c0_124] : memref<1x60xf32, #tpu.memory_space<vmem>>, vector<1x60xf32>
    %111 = arith.addf %109, %110 : vector<1x60xf32>
    %cst_125 = arith.constant 0.000000e+00 : f32
    %112 = vector.broadcast %cst_125 : f32 to vector<1x60xf32>
    %113 = arith.maximumf %111, %112 : vector<1x60xf32>
    %c0_126 = arith.constant 0 : index
    %c0_127 = arith.constant 0 : index
    %114 = vector.load %arg18[%c0_126, %c0_127] : memref<60x10xf32, #tpu.memory_space<vmem>>, vector<60x10xf32>
    %cst_128 = arith.constant dense<0.000000e+00> : vector<1x10xf32>
    %115 = tpu.matmul %113, %114, %cst_128 {dimension_numbers = #tpu.dot_dimension_numbers<[1], [0], [0], [1], [0, 0, 1, 1], [], []>} : vector<1x60xf32>, vector<60x10xf32>, vector<1x10xf32> -> vector<1x10xf32>
    %c0_129 = arith.constant 0 : index
    %c0_130 = arith.constant 0 : index
    %116 = vector.load %arg19[%c0_129, %c0_130] : memref<1x10xf32, #tpu.memory_space<vmem>>, vector<1x10xf32>
    %117 = arith.addf %115, %116 : vector<1x10xf32>
    %c0_131 = arith.constant 0 : index
    %c0_132 = arith.constant 0 : index
    %c0_133 = arith.constant 0 : index
    %118 = vector.load %arg20[%c0_131, %c0_132, %c0_133] : memref<1x1x10xf32, #tpu.memory_space<vmem>>, vector<1x1x10xf32>
    %119 = vector.shape_cast %118 : vector<1x1x10xf32> to vector<1x10xf32>
    %120 = vector.shape_cast %117 : vector<1x10xf32> to vector<1x1x10xf32>
    tpu.vector_store %arg20[%c0_131, %c0_132, %c0_133], %120 {strides = array<i32>} : memref<1x1x10xf32, #tpu.memory_space<vmem>>, vector<1x1x10xf32>,
    return
  }
  func.func @transform_0(%arg0: i32) -> (i32, i32, i32) {
    %c0_i32 = arith.constant 0 : i32
    %c0_i32_0 = arith.constant 0 : i32
    %c0_i32_1 = arith.constant 0 : i32
    return %arg0, %c0_i32, %c0_i32_0 : i32, i32, i32
  }
  func.func @transform_1(%arg0: i32) -> (i32, i32, i32) {
    %c0_i32 = arith.constant 0 : i32
    %c0_i32_0 = arith.constant 0 : i32
    %c0_i32_1 = arith.constant 0 : i32
    %c0_i32_2 = arith.constant 0 : i32
    return %c0_i32, %c0_i32_0, %c0_i32_1 : i32, i32, i32
  }
  func.func @transform_2(%arg0: i32) -> (i32, i32) {
    %c0_i32 = arith.constant 0 : i32
    %c0_i32_0 = arith.constant 0 : i32
    %c0_i32_1 = arith.constant 0 : i32
    return %c0_i32, %c0_i32_0 : i32, i32
  }
  func.func @transform_3(%arg0: i32) -> (i32, i32) {
    %c0_i32 = arith.constant 0 : i32
    %c0_i32_0 = arith.constant 0 : i32
    %c0_i32_1 = arith.constant 0 : i32
    return %c0_i32, %c0_i32_0 : i32, i32
  }
  func.func @transform_4(%arg0: i32) -> (i32, i32) {
    %c0_i32 = arith.constant 0 : i32
    %c0_i32_0 = arith.constant 0 : i32
    %c0_i32_1 = arith.constant 0 : i32
    return %c0_i32, %c0_i32_0 : i32, i32
  }
  func.func @transform_5(%arg0: i32) -> (i32, i32) {
    %c0_i32 = arith.constant 0 : i32
    %c0_i32_0 = arith.constant 0 : i32
    %c0_i32_1 = arith.constant 0 : i32
    return %c0_i32, %c0_i32_0 : i32, i32
  }
  func.func @transform_6(%arg0: i32) -> (i32, i32) {
    %c0_i32 = arith.constant 0 : i32
    %c0_i32_0 = arith.constant 0 : i32
    %c0_i32_1 = arith.constant 0 : i32
    return %c0_i32, %c0_i32_0 : i32, i32
  }
  func.func @transform_7(%arg0: i32) -> (i32, i32, i32) {
    %c0_i32 = arith.constant 0 : i32
    %c0_i32_0 = arith.constant 0 : i32
    %c0_i32_1 = arith.constant 0 : i32
    %c0_i32_2 = arith.constant 0 : i32
    return %c0_i32, %c0_i32_0, %c0_i32_1 : i32, i32, i32
  }
  func.func @transform_8(%arg0: i32) -> (i32, i32) {
    %c0_i32 = arith.constant 0 : i32
    %c0_i32_0 = arith.constant 0 : i32
    %c0_i32_1 = arith.constant 0 : i32
    return %c0_i32, %c0_i32_0 : i32, i32
  }
  func.func @transform_9(%arg0: i32) -> (i32, i32) {
    %c0_i32 = arith.constant 0 : i32
    %c0_i32_0 = arith.constant 0 : i32
    %c0_i32_1 = arith.constant 0 : i32
    return %c0_i32, %c0_i32_0 : i32, i32
  }
  func.func @transform_10(%arg0: i32) -> (i32, i32) {
    %c0_i32 = arith.constant 0 : i32
    %c0_i32_0 = arith.constant 0 : i32
    %c0_i32_1 = arith.constant 0 : i32
    return %c0_i32, %c0_i32_0 : i32, i32
  }
  func.func @transform_11(%arg0: i32) -> (i32, i32) {
    %c0_i32 = arith.constant 0 : i32
    %c0_i32_0 = arith.constant 0 : i32
    %c0_i32_1 = arith.constant 0 : i32
    return %c0_i32, %c0_i32_0 : i32, i32
  }
  func.func @transform_12(%arg0: i32) -> (i32, i32) {
    %c0_i32 = arith.constant 0 : i32
    %c0_i32_0 = arith.constant 0 : i32
    %c0_i32_1 = arith.constant 0 : i32
    return %c0_i32, %c0_i32_0 : i32, i32
  }
  func.func @transform_13(%arg0: i32) -> (i32, i32, i32) {
    %c0_i32 = arith.constant 0 : i32
    %c0_i32_0 = arith.constant 0 : i32
    %c0_i32_1 = arith.constant 0 : i32
    %c0_i32_2 = arith.constant 0 : i32
    return %c0_i32, %c0_i32_0, %c0_i32_1 : i32, i32, i32
  }
  func.func @transform_14(%arg0: i32) -> (i32, i32) {
    %c0_i32 = arith.constant 0 : i32
    %c0_i32_0 = arith.constant 0 : i32
    %c0_i32_1 = arith.constant 0 : i32
    return %c0_i32, %c0_i32_0 : i32, i32
  }
  func.func @transform_15(%arg0: i32) -> (i32, i32) {
    %c0_i32 = arith.constant 0 : i32
    %c0_i32_0 = arith.constant 0 : i32
    %c0_i32_1 = arith.constant 0 : i32
    return %c0_i32, %c0_i32_0 : i32, i32
  }
  func.func @transform_16(%arg0: i32) -> (i32, i32) {
    %c0_i32 = arith.constant 0 : i32
    %c0_i32_0 = arith.constant 0 : i32
    %c0_i32_1 = arith.constant 0 : i32
    return %c0_i32, %c0_i32_0 : i32, i32
  }
  func.func @transform_17(%arg0: i32) -> (i32, i32) {
    %c0_i32 = arith.constant 0 : i32
    %c0_i32_0 = arith.constant 0 : i32
    %c0_i32_1 = arith.constant 0 : i32
    return %c0_i32, %c0_i32_0 : i32, i32
  }
  func.func @transform_18(%arg0: i32) -> (i32, i32) {
    %c0_i32 = arith.constant 0 : i32
    %c0_i32_0 = arith.constant 0 : i32
    %c0_i32_1 = arith.constant 0 : i32
    return %c0_i32, %c0_i32_0 : i32, i32
  }
  func.func @transform_19(%arg0: i32) -> (i32, i32, i32) {
    %c0_i32 = arith.constant 0 : i32
    %c0_i32_0 = arith.constant 0 : i32
    %c0_i32_1 = arith.constant 0 : i32
    return %arg0, %c0_i32, %c0_i32_0 : i32, i32, i32
  }
}

</mosaic_0001>

<llo_original>
// kernel: network_forward.1
$region0: #{network_forward.1}
  #allocation0 [shape = 'u32[]', space=smem, size = 0x4, offset = 0x4, fixed_abs, tag = 'smem constant byte address 0x4 - core index']
  #allocation1 [shape = 'u32[72,128]{1,0:T(1,128)}', space=vmem, size = 0x9000, scoped, tag = 'internal scratch']
  #allocation2 [shape = 'f32[12,72]{1,0:T(8,128)}', space=vmem, size = 0x2000, scoped, tag = 'scratch operand']
  #allocation3 [shape = 'f32[4,48]{1,0:T(4,128)}', space=vmem, size = 0x800, scoped, tag = 'scratch operand']
  %s0 = inlined_call_operand.vmem [shape: f32[2,28,28], index: 0, kind: input, shape index: {}]
  %s1 = inlined_call_operand.hbm [shape: f32[5,28,144], index: 1, kind: input, shape index: {}]
  %s2 = inlined_call_operand.vmem [shape: f32[1,144], index: 2, kind: input, shape index: {}]
  %s3 = inlined_call_operand.vmem [shape: f32[12,24], index: 3, kind: input, shape index: {}]
  %s4 = inlined_call_operand.vmem [shape: f32[12,24], index: 4, kind: input, shape index: {}]
  %s5 = inlined_call_operand.vmem [shape: f32[144,72], index: 5, kind: input, shape index: {}]
  %s6 = inlined_call_operand.vmem [shape: f32[144,72], index: 6, kind: input, shape index: {}]
  %s7 = inlined_call_operand.hbm [shape: f32[5,72,96], index: 7, kind: input, shape index: {}]
  %s8 = inlined_call_operand.vmem [shape: f32[1,96], index: 8, kind: input, shape index: {}]
  %s9 = inlined_call_operand.vmem [shape: f32[4,8], index: 9, kind: input, shape index: {}]
  %s10 = inlined_call_operand.vmem [shape: f32[4,8], index: 10, kind: input, shape index: {}]
  %s11 = inlined_call_operand.vmem [shape: f32[96,48], index: 11, kind: input, shape index: {}]
  %s12 = inlined_call_operand.vmem [shape: f32[96,48], index: 12, kind: input, shape index: {}]
  %s13 = inlined_call_operand.vmem [shape: f32[4,48,120], index: 13, kind: input, shape index: {}]
  %s14 = inlined_call_operand.vmem [shape: f32[1,120], index: 14, kind: input, shape index: {}]
  %s15 = inlined_call_operand.vmem [shape: f32[120,60], index: 15, kind: input, shape index: {}]
  %s16 = inlined_call_operand.vmem [shape: f32[1,60], index: 16, kind: input, shape index: {}]
  %s17 = inlined_call_operand.vmem [shape: f32[60,10], index: 17, kind: input, shape index: {}]
  %s18 = inlined_call_operand.vmem [shape: f32[1,10], index: 18, kind: input, shape index: {}]
  %s19 = inlined_call_operand.hbm [shape: f32[2,1,10], index: 19, kind: output, shape index: {}]
  %s20 = sld [smem:[#allocation0]]
  $region117: #{network_forward.1} parent=0
    _
  %s22 = ssub.s32 1, %s20
  %s23 = scalar_select 0, %s22, %s20
  $region1: #{network_forward.1} parent=0
    #allocation4 [shape = 'u8[163840]{0}', space=vmem, size = 0x28000, scoped, tag = 'input window, operand 1, single buffered']
    #allocation5 [shape = 's32[2]{0}', space=sflag, size = 0x8, scoped, tag = 'scoped memory for network_forward.1']
    #allocation6 [shape = 's32[2]{0}', space=sflag, size = 0x8, scoped, tag = 'scoped memory for network_forward.1']
    #allocation7 [shape = 'u8[184320]{0}', space=vmem, size = 0x2d000, scoped, tag = 'input window, operand 7, single buffered']
    #allocation8 [shape = 's32[1]{0}', space=sflag, size = 0x4, scoped, tag = 'scoped memory for network_forward.1']
    #allocation9 [shape = 'u8[1024]{0}', space=vmem, size = 0x400, scoped, tag = 'output window, operand 0']
    %24 = vsyncpa [#allocation5], 0
    %25 = vsyncpa [#allocation8], 0
    %26 = vsyncpa [#allocation6], 0
    %s27 = scalar_lea.sflag [#allocation6], 1
    %28 = vsyncpa %s27, 0
    loop: start=0, step=1, limit=4
    $region2: #{network_forward.1} parent=1 // loop_pre_header
      _
    $region3: #{network_forward.1} parent=1 // loop_header
      %s30 = sphi 0, %s34
      %p31 = scmp.ge.s32.totalorder %s30, 4
      %s40 = sphi 0, %s42
      %s43 = sphi 0, %s40
      %s44 = sphi 0, %s43
      %s60 = sphi 0, %s44
      %s64 = sphi 0, %s64
      %s66 = sphi 0, %s64
      %s67 = sphi 0, %s66
      %s81 = sphi 0, %s67
      %s85 = sphi 0, %s85
      %s87 = sphi 0, %s85
      %s88 = sphi 0, %s87
      %s102 = sphi 0, %s88
      %s106 = sphi 0, %s106
      %s108 = sphi 0, %s106
      %s109 = sphi 0, %s108
      %s123 = sphi 0, %s109
      %s127 = sphi 0, %s127
      %s129 = sphi 0, %s127
      %s130 = sphi 0, %s129
      %s144 = sphi 0, %s130
      %s148 = sphi 0, %s148
      %s150 = sphi 0, %s148
      %s151 = sphi 0, %s150
      %s165 = sphi 0, %s151
      %s169 = sphi 0, %s169
      %s171 = sphi 0, %s169
      %s172 = sphi 0, %s171
      %s186 = sphi 0, %s172
      %s190 = sphi 0, %s190
      %s192 = sphi 0, %s190
      %s193 = sphi 0, %s192
      %s207 = sphi 0, %s193
      %s211 = sphi 0, %s211
      %s213 = sphi 0, %s211
      %s214 = sphi 0, %s213
      %s228 = sphi 0, %s214
      %s232 = sphi 0, %s232
      %s234 = sphi 0, %s232
      %s235 = sphi 0, %s234
      %s249 = sphi 0, %s235
      %s253 = sphi 0, %s253
      %s255 = sphi 0, %s253
      %s256 = sphi 0, %s255
      %s270 = sphi 0, %s256
      %s274 = sphi 0, %s274
      %s276 = sphi 0, %s274
      %s277 = sphi 0, %s276
      %s291 = sphi 0, %s277
      %s295 = sphi 0, %s295
      %s297 = sphi 0, %s295
      %s298 = sphi 0, %s297
      %s312 = sphi 0, %s298
      %s316 = sphi 0, %s316
      %s318 = sphi 0, %s316
      %s319 = sphi 0, %s318
      %s333 = sphi 0, %s319
      %s337 = sphi 0, %s337
      %s339 = sphi 0, %s337
      %s340 = sphi 0, %s339
      %s354 = sphi 0, %s340
      %s358 = sphi 0, %s358
      %s360 = sphi 0, %s358
      %s361 = sphi 0, %s360
      %s375 = sphi 0, %s361
      %s379 = sphi 0, %s379
      %s381 = sphi 0, %s379
      %s382 = sphi 0, %s381
      %s396 = sphi 0, %s382
      %s400 = sphi 0, %s400
      %s402 = sphi 0, %s400
      %s403 = sphi 0, %s402
      %s417 = sphi 0, %s403
      %s421 = sphi 0, %s421
      %s423 = sphi 0, %s421
      %s424 = sphi 0, %s423
      %s438 = sphi 0, %s424
      %s444 = sphi 0, %s446
      %s447 = sphi 0, %s444
      %s448 = sphi 0, %s447
      %s464 = sphi 0, %s448
    $region4: #{network_forward.1} parent=1 // loop_header_branch
      %33 = sbr.rel (%p31) target = $region8
    $region5: #{network_forward.1} parent=1 // loop_body
      %s35 = ssub.s32 %s30, 1
      %s36 = ssub.s32 %s30, 2
      %s37 = sadd.s32 %s30, 1
      %s38 = ssub.s32 %s30, %s37
      %p39 = scmp.eq.s32.totalorder %s38, 0
      %s41 = sadd.s32 %s40, 1
      %s42 = scalar_select %p39, %s40, %s41
      %p45 = pneg %p39
      %p46 = scmp.eq.s32.totalorder %s30, 1
      %p47 = por %p45, %p46
      %p48 = scmp.ne.s32.totalorder %s40, %s43
      %p49 = scmp.eq.s32.totalorder %s30, 0
      %p50 = por %p48, %p49
      %p51 = scmp.ne.s32.totalorder %s40, %s43
      %p52 = scmp.eq.s32.totalorder %s35, 1
      %p53 = por %p51, %p52
      %p54 = scmp.ne.s32.totalorder %s43, %s44
      %p55 = scmp.eq.s32.totalorder %s35, 0
      %p56 = por %p54, %p55
      %p57 = scmp.ne.s32.totalorder %s43, %s44
      %p58 = scmp.eq.s32.totalorder %s36, 1
      %p59 = por %p57, %p58
      %p61 = scmp.ne.s32.totalorder %s44, %s60
      %p62 = scmp.eq.s32.totalorder %s36, 0
      %p63 = por %p61, %p62
      %s65 = sadd.s32 %s64, 1
      %p68 = scmp.eq.s32.totalorder %s30, 1
      %p69 = scmp.ne.s32.totalorder %s64, %s66
      %p70 = scmp.eq.s32.totalorder %s30, 0
      %p71 = por %p69, %p70
      %p72 = scmp.ne.s32.totalorder %s64, %s66
      %p73 = scmp.eq.s32.totalorder %s35, 1
      %p74 = por %p72, %p73
      %p75 = scmp.ne.s32.totalorder %s66, %s67
      %p76 = scmp.eq.s32.totalorder %s35, 0
      %p77 = por %p75, %p76
      %p78 = scmp.ne.s32.totalorder %s66, %s67
      %p79 = scmp.eq.s32.totalorder %s36, 1
      %p80 = por %p78, %p79
      %p82 = scmp.ne.s32.totalorder %s67, %s81
      %p83 = scmp.eq.s32.totalorder %s36, 0
      %p84 = por %p82, %p83
      %s86 = sadd.s32 %s85, 1
      %p89 = scmp.eq.s32.totalorder %s30, 1
      %p90 = scmp.ne.s32.totalorder %s85, %s87
      %p91 = scmp.eq.s32.totalorder %s30, 0
      %p92 = por %p90, %p91
      %p93 = scmp.ne.s32.totalorder %s85, %s87
      %p94 = scmp.eq.s32.totalorder %s35, 1
      %p95 = por %p93, %p94
      %p96 = scmp.ne.s32.totalorder %s87, %s88
      %p97 = scmp.eq.s32.totalorder %s35, 0
      %p98 = por %p96, %p97
      %p99 = scmp.ne.s32.totalorder %s87, %s88
      %p100 = scmp.eq.s32.totalorder %s36, 1
      %p101 = por %p99, %p100
      %p103 = scmp.ne.s32.totalorder %s88, %s102
      %p104 = scmp.eq.s32.totalorder %s36, 0
      %p105 = por %p103, %p104
      %s107 = sadd.s32 %s106, 1
      %p110 = scmp.eq.s32.totalorder %s30, 1
      %p111 = scmp.ne.s32.totalorder %s106, %s108
      %p112 = scmp.eq.s32.totalorder %s30, 0
      %p113 = por %p111, %p112
      %p114 = scmp.ne.s32.totalorder %s106, %s108
      %p115 = scmp.eq.s32.totalorder %s35, 1
      %p116 = por %p114, %p115
      %p117 = scmp.ne.s32.totalorder %s108, %s109
      %p118 = scmp.eq.s32.totalorder %s35, 0
      %p119 = por %p117, %p118
      %p120 = scmp.ne.s32.totalorder %s108, %s109
      %p121 = scmp.eq.s32.totalorder %s36, 1
      %p122 = por %p120, %p121
      %p124 = scmp.ne.s32.totalorder %s109, %s123
      %p125 = scmp.eq.s32.totalorder %s36, 0
      %p126 = por %p124, %p125
      %s128 = sadd.s32 %s127, 1
      %p131 = scmp.eq.s32.totalorder %s30, 1
      %p132 = scmp.ne.s32.totalorder %s127, %s129
      %p133 = scmp.eq.s32.totalorder %s30, 0
      %p134 = por %p132, %p133
      %p135 = scmp.ne.s32.totalorder %s127, %s129
      %p136 = scmp.eq.s32.totalorder %s35, 1
      %p137 = por %p135, %p136
      %p138 = scmp.ne.s32.totalorder %s129, %s130
      %p139 = scmp.eq.s32.totalorder %s35, 0
      %p140 = por %p138, %p139
      %p141 = scmp.ne.s32.totalorder %s129, %s130
      %p142 = scmp.eq.s32.totalorder %s36, 1
      %p143 = por %p141, %p142
      %p145 = scmp.ne.s32.totalorder %s130, %s144
      %p146 = scmp.eq.s32.totalorder %s36, 0
      %p147 = por %p145, %p146
      %s149 = sadd.s32 %s148, 1
      %p152 = scmp.eq.s32.totalorder %s30, 1
      %p153 = scmp.ne.s32.totalorder %s148, %s150
      %p154 = scmp.eq.s32.totalorder %s30, 0
      %p155 = por %p153, %p154
      %p156 = scmp.ne.s32.totalorder %s148, %s150
      %p157 = scmp.eq.s32.totalorder %s35, 1
      %p158 = por %p156, %p157
      %p159 = scmp.ne.s32.totalorder %s150, %s151
      %p160 = scmp.eq.s32.totalorder %s35, 0
      %p161 = por %p159, %p160
      %p162 = scmp.ne.s32.totalorder %s150, %s151
      %p163 = scmp.eq.s32.totalorder %s36, 1
      %p164 = por %p162, %p163
      %p166 = scmp.ne.s32.totalorder %s151, %s165
      %p167 = scmp.eq.s32.totalorder %s36, 0
      %p168 = por %p166, %p167
      %s170 = sadd.s32 %s169, 1
      %p173 = scmp.eq.s32.totalorder %s30, 1
      %p174 = scmp.ne.s32.totalorder %s169, %s171
      %p175 = scmp.eq.s32.totalorder %s30, 0
      %p176 = por %p174, %p175
      %p177 = scmp.ne.s32.totalorder %s169, %s171
      %p178 = scmp.eq.s32.totalorder %s35, 1
      %p179 = por %p177, %p178
      %p180 = scmp.ne.s32.totalorder %s171, %s172
      %p181 = scmp.eq.s32.totalorder %s35, 0
      %p182 = por %p180, %p181
      %p183 = scmp.ne.s32.totalorder %s171, %s172
      %p184 = scmp.eq.s32.totalorder %s36, 1
      %p185 = por %p183, %p184
      %p187 = scmp.ne.s32.totalorder %s172, %s186
      %p188 = scmp.eq.s32.totalorder %s36, 0
      %p189 = por %p187, %p188
      %s191 = sadd.s32 %s190, 1
      %p194 = scmp.eq.s32.totalorder %s30, 1
      %p195 = scmp.ne.s32.totalorder %s190, %s192
      %p196 = scmp.eq.s32.totalorder %s30, 0
      %p197 = por %p195, %p196
      %p198 = scmp.ne.s32.totalorder %s190, %s192
      %p199 = scmp.eq.s32.totalorder %s35, 1
      %p200 = por %p198, %p199
      %p201 = scmp.ne.s32.totalorder %s192, %s193
      %p202 = scmp.eq.s32.totalorder %s35, 0
      %p203 = por %p201, %p202
      %p204 = scmp.ne.s32.totalorder %s192, %s193
      %p205 = scmp.eq.s32.totalorder %s36, 1
      %p206 = por %p204, %p205
      %p208 = scmp.ne.s32.totalorder %s193, %s207
      %p209 = scmp.eq.s32.totalorder %s36, 0
      %p210 = por %p208, %p209
      %s212 = sadd.s32 %s211, 1
      %p215 = scmp.eq.s32.totalorder %s30, 1
      %p216 = scmp.ne.s32.totalorder %s211, %s213
      %p217 = scmp.eq.s32.totalorder %s30, 0
      %p218 = por %p216, %p217
      %p219 = scmp.ne.s32.totalorder %s211, %s213
      %p220 = scmp.eq.s32.totalorder %s35, 1
      %p221 = por %p219, %p220
      %p222 = scmp.ne.s32.totalorder %s213, %s214
      %p223 = scmp.eq.s32.totalorder %s35, 0
      %p224 = por %p222, %p223
      %p225 = scmp.ne.s32.totalorder %s213, %s214
      %p226 = scmp.eq.s32.totalorder %s36, 1
      %p227 = por %p225, %p226
      %p229 = scmp.ne.s32.totalorder %s214, %s228
      %p230 = scmp.eq.s32.totalorder %s36, 0
      %p231 = por %p229, %p230
      %s233 = sadd.s32 %s232, 1
      %p236 = scmp.eq.s32.totalorder %s30, 1
      %p237 = scmp.ne.s32.totalorder %s232, %s234
      %p238 = scmp.eq.s32.totalorder %s30, 0
      %p239 = por %p237, %p238
      %p240 = scmp.ne.s32.totalorder %s232, %s234
      %p241 = scmp.eq.s32.totalorder %s35, 1
      %p242 = por %p240, %p241
      %p243 = scmp.ne.s32.totalorder %s234, %s235
      %p244 = scmp.eq.s32.totalorder %s35, 0
      %p245 = por %p243, %p244
      %p246 = scmp.ne.s32.totalorder %s234, %s235
      %p247 = scmp.eq.s32.totalorder %s36, 1
      %p248 = por %p246, %p247
      %p250 = scmp.ne.s32.totalorder %s235, %s249
      %p251 = scmp.eq.s32.totalorder %s36, 0
      %p252 = por %p250, %p251
      %s254 = sadd.s32 %s253, 1
      %p257 = scmp.eq.s32.totalorder %s30, 1
      %p258 = scmp.ne.s32.totalorder %s253, %s255
      %p259 = scmp.eq.s32.totalorder %s30, 0
      %p260 = por %p258, %p259
      %p261 = scmp.ne.s32.totalorder %s253, %s255
      %p262 = scmp.eq.s32.totalorder %s35, 1
      %p263 = por %p261, %p262
      %p264 = scmp.ne.s32.totalorder %s255, %s256
      %p265 = scmp.eq.s32.totalorder %s35, 0
      %p266 = por %p264, %p265
      %p267 = scmp.ne.s32.totalorder %s255, %s256
      %p268 = scmp.eq.s32.totalorder %s36, 1
      %p269 = por %p267, %p268
      %p271 = scmp.ne.s32.totalorder %s256, %s270
      %p272 = scmp.eq.s32.totalorder %s36, 0
      %p273 = por %p271, %p272
      %s275 = sadd.s32 %s274, 1
      %p278 = scmp.eq.s32.totalorder %s30, 1
      %p279 = scmp.ne.s32.totalorder %s274, %s276
      %p280 = scmp.eq.s32.totalorder %s30, 0
      %p281 = por %p279, %p280
      %p282 = scmp.ne.s32.totalorder %s274, %s276
      %p283 = scmp.eq.s32.totalorder %s35, 1
      %p284 = por %p282, %p283
      %p285 = scmp.ne.s32.totalorder %s276, %s277
      %p286 = scmp.eq.s32.totalorder %s35, 0
      %p287 = por %p285, %p286
      %p288 = scmp.ne.s32.totalorder %s276, %s277
      %p289 = scmp.eq.s32.totalorder %s36, 1
      %p290 = por %p288, %p289
      %p292 = scmp.ne.s32.totalorder %s277, %s291
      %p293 = scmp.eq.s32.totalorder %s36, 0
      %p294 = por %p292, %p293
      %s296 = sadd.s32 %s295, 1
      %p299 = scmp.eq.s32.totalorder %s30, 1
      %p300 = scmp.ne.s32.totalorder %s295, %s297
      %p301 = scmp.eq.s32.totalorder %s30, 0
      %p302 = por %p300, %p301
      %p303 = scmp.ne.s32.totalorder %s295, %s297
      %p304 = scmp.eq.s32.totalorder %s35, 1
      %p305 = por %p303, %p304
      %p306 = scmp.ne.s32.totalorder %s297, %s298
      %p307 = scmp.eq.s32.totalorder %s35, 0
      %p308 = por %p306, %p307
      %p309 = scmp.ne.s32.totalorder %s297, %s298
      %p310 = scmp.eq.s32.totalorder %s36, 1
      %p311 = por %p309, %p310
      %p313 = scmp.ne.s32.totalorder %s298, %s312
      %p314 = scmp.eq.s32.totalorder %s36, 0
      %p315 = por %p313, %p314
      %s317 = sadd.s32 %s316, 1
      %p320 = scmp.eq.s32.totalorder %s30, 1
      %p321 = scmp.ne.s32.totalorder %s316, %s318
      %p322 = scmp.eq.s32.totalorder %s30, 0
      %p323 = por %p321, %p322
      %p324 = scmp.ne.s32.totalorder %s316, %s318
      %p325 = scmp.eq.s32.totalorder %s35, 1
      %p326 = por %p324, %p325
      %p327 = scmp.ne.s32.totalorder %s318, %s319
      %p328 = scmp.eq.s32.totalorder %s35, 0
      %p329 = por %p327, %p328
      %p330 = scmp.ne.s32.totalorder %s318, %s319
      %p331 = scmp.eq.s32.totalorder %s36, 1
      %p332 = por %p330, %p331
      %p334 = scmp.ne.s32.totalorder %s319, %s333
      %p335 = scmp.eq.s32.totalorder %s36, 0
      %p336 = por %p334, %p335
      %s338 = sadd.s32 %s337, 1
      %p341 = scmp.eq.s32.totalorder %s30, 1
      %p342 = scmp.ne.s32.totalorder %s337, %s339
      %p343 = scmp.eq.s32.totalorder %s30, 0
      %p344 = por %p342, %p343
      %p345 = scmp.ne.s32.totalorder %s337, %s339
      %p346 = scmp.eq.s32.totalorder %s35, 1
      %p347 = por %p345, %p346
      %p348 = scmp.ne.s32.totalorder %s339, %s340
      %p349 = scmp.eq.s32.totalorder %s35, 0
      %p350 = por %p348, %p349
      %p351 = scmp.ne.s32.totalorder %s339, %s340
      %p352 = scmp.eq.s32.totalorder %s36, 1
      %p353 = por %p351, %p352
      %p355 = scmp.ne.s32.totalorder %s340, %s354
      %p356 = scmp.eq.s32.totalorder %s36, 0
      %p357 = por %p355, %p356
      %s359 = sadd.s32 %s358, 1
      %p362 = scmp.eq.s32.totalorder %s30, 1
      %p363 = scmp.ne.s32.totalorder %s358, %s360
      %p364 = scmp.eq.s32.totalorder %s30, 0
      %p365 = por %p363, %p364
      %p366 = scmp.ne.s32.totalorder %s358, %s360
      %p367 = scmp.eq.s32.totalorder %s35, 1
      %p368 = por %p366, %p367
      %p369 = scmp.ne.s32.totalorder %s360, %s361
      %p370 = scmp.eq.s32.totalorder %s35, 0
      %p371 = por %p369, %p370
      %p372 = scmp.ne.s32.totalorder %s360, %s361
      %p373 = scmp.eq.s32.totalorder %s36, 1
      %p374 = por %p372, %p373
      %p376 = scmp.ne.s32.totalorder %s361, %s375
      %p377 = scmp.eq.s32.totalorder %s36, 0
      %p378 = por %p376, %p377
      %s380 = sadd.s32 %s379, 1
      %p383 = scmp.eq.s32.totalorder %s30, 1
      %p384 = scmp.ne.s32.totalorder %s379, %s381
      %p385 = scmp.eq.s32.totalorder %s30, 0
      %p386 = por %p384, %p385
      %p387 = scmp.ne.s32.totalorder %s379, %s381
      %p388 = scmp.eq.s32.totalorder %s35, 1
      %p389 = por %p387, %p388
      %p390 = scmp.ne.s32.totalorder %s381, %s382
      %p391 = scmp.eq.s32.totalorder %s35, 0
      %p392 = por %p390, %p391
      %p393 = scmp.ne.s32.totalorder %s381, %s382
      %p394 = scmp.eq.s32.totalorder %s36, 1
      %p395 = por %p393, %p394
      %p397 = scmp.ne.s32.totalorder %s382, %s396
      %p398 = scmp.eq.s32.totalorder %s36, 0
      %p399 = por %p397, %p398
      %s401 = sadd.s32 %s400, 1
      %p404 = scmp.eq.s32.totalorder %s30, 1
      %p405 = scmp.ne.s32.totalorder %s400, %s402
      %p406 = scmp.eq.s32.totalorder %s30, 0
      %p407 = por %p405, %p406
      %p408 = scmp.ne.s32.totalorder %s400, %s402
      %p409 = scmp.eq.s32.totalorder %s35, 1
      %p410 = por %p408, %p409
      %p411 = scmp.ne.s32.totalorder %s402, %s403
      %p412 = scmp.eq.s32.totalorder %s35, 0
      %p413 = por %p411, %p412
      %p414 = scmp.ne.s32.totalorder %s402, %s403
      %p415 = scmp.eq.s32.totalorder %s36, 1
      %p416 = por %p414, %p415
      %p418 = scmp.ne.s32.totalorder %s403, %s417
      %p419 = scmp.eq.s32.totalorder %s36, 0
      %p420 = por %p418, %p419
      %s422 = sadd.s32 %s421, 1
      %p425 = scmp.eq.s32.totalorder %s30, 1
      %p426 = scmp.ne.s32.totalorder %s421, %s423
      %p427 = scmp.eq.s32.totalorder %s30, 0
      %p428 = por %p426, %p427
      %p429 = scmp.ne.s32.totalorder %s421, %s423
      %p430 = scmp.eq.s32.totalorder %s35, 1
      %p431 = por %p429, %p430
      %p432 = scmp.ne.s32.totalorder %s423, %s424
      %p433 = scmp.eq.s32.totalorder %s35, 0
      %p434 = por %p432, %p433
      %p435 = scmp.ne.s32.totalorder %s423, %s424
      %p436 = scmp.eq.s32.totalorder %s36, 1
      %p437 = por %p435, %p436
      %p439 = scmp.ne.s32.totalorder %s424, %s438
      %p440 = scmp.eq.s32.totalorder %s36, 0
      %p441 = por %p439, %p440
      %s442 = ssub.s32 %s30, %s37
      %p443 = scmp.eq.s32.totalorder %s442, 0
      %s445 = sadd.s32 %s444, 1
      %s446 = scalar_select %p443, %s444, %s445
      %p449 = pneg %p443
      %p450 = scmp.eq.s32.totalorder %s30, 1
      %p451 = por %p449, %p450
      %p452 = scmp.ne.s32.totalorder %s444, %s447
      %p453 = scmp.eq.s32.totalorder %s30, 0
      %p454 = por %p452, %p453
      %p455 = scmp.ne.s32.totalorder %s444, %s447
      %p456 = scmp.eq.s32.totalorder %s35, 1
      %p457 = por %p455, %p456
      %p458 = scmp.ne.s32.totalorder %s447, %s448
      %p459 = scmp.eq.s32.totalorder %s35, 0
      %p460 = por %p458, %p459
      %p461 = scmp.ne.s32.totalorder %s447, %s448
      %p462 = scmp.eq.s32.totalorder %s36, 1
      %p463 = por %p461, %p462
      %p465 = scmp.ne.s32.totalorder %s448, %s464
      %p466 = scmp.eq.s32.totalorder %s36, 0
      %p467 = por %p465, %p466
      %p468 = scmp.le.s32.totalorder 1, %s30
      %p469 = scmp.lt.s32.totalorder %s30, 3
      %p470 = pnand %p468, %p469
      %p471 = pneg %p470
      // Predicated region
      $region9: #{network_forward.1} parent=5 // pred_check
        _
      $region10: #{network_forward.1} parent=5 // pred_check_branch
        %473 = sbr.rel (%p470) target = $region12
      $region11: #{network_forward.1} parent=5 // pred_region
        %s474 = ssub.s32 %s30, 1
        // Predicated region
        $region13: #{network_forward.1} parent=11 // pred_check
          %p475 = pneg %p77
        $region14: #{network_forward.1} parent=11 // pred_check_branch
          %477 = sbr.rel (%p475) target = $region16
        $region15: #{network_forward.1} parent=11 // pred_region
          %479 = vsyncadd [#allocation5], 0
          %s480 = sshll.u32 %s1, 4
          %s481 = int_to_ptr.hbm [resolvable:$true] %s480
          %s482 = sshll.u32 [#allocation4], 4
          %s483 = int_to_ptr.vmem [resolvable:$true] %s482
          %488 = dma.hbm_to_vmem [thread:$0]  %s481, 5120, %s483, [#allocation5], 256, 256, 16
        $region16: #{network_forward.1} parent=11 // pred_fallthru
          _
        // Predicated region
        $region17: #{network_forward.1} parent=11 // pred_check
          %p489 = pneg %p98
        $region18: #{network_forward.1} parent=11 // pred_check_branch
          %491 = sbr.rel (%p489) target = $region20
        $region19: #{network_forward.1} parent=11 // pred_region
          _
        $region20: #{network_forward.1} parent=11 // pred_fallthru
          _
        // Predicated region
        $region21: #{network_forward.1} parent=11 // pred_check
          %p492 = pneg %p119
        $region22: #{network_forward.1} parent=11 // pred_check_branch
          %494 = sbr.rel (%p492) target = $region24
        $region23: #{network_forward.1} parent=11 // pred_region
          _
        $region24: #{network_forward.1} parent=11 // pred_fallthru
          _
        // Predicated region
        $region25: #{network_forward.1} parent=11 // pred_check
          %p495 = pneg %p140
        $region26: #{network_forward.1} parent=11 // pred_check_branch
          %497 = sbr.rel (%p495) target = $region28
        $region27: #{network_forward.1} parent=11 // pred_region
          _
        $region28: #{network_forward.1} parent=11 // pred_fallthru
          _
        // Predicated region
        $region29: #{network_forward.1} parent=11 // pred_check
          %p498 = pneg %p161
        $region30: #{network_forward.1} parent=11 // pred_check_branch
          %500 = sbr.rel (%p498) target = $region32
        $region31: #{network_forward.1} parent=11 // pred_region
          _
        $region32: #{network_forward.1} parent=11 // pred_fallthru
          _
        // Predicated region
        $region33: #{network_forward.1} parent=11 // pred_check
          %p501 = pneg %p182
        $region34: #{network_forward.1} parent=11 // pred_check_branch
          %503 = sbr.rel (%p501) target = $region36
        $region35: #{network_forward.1} parent=11 // pred_region
          _
        $region36: #{network_forward.1} parent=11 // pred_fallthru
          _
        // Predicated region
        $region37: #{network_forward.1} parent=11 // pred_check
          %p504 = pneg %p203
        $region38: #{network_forward.1} parent=11 // pred_check_branch
          %506 = sbr.rel (%p504) target = $region40
        $region39: #{network_forward.1} parent=11 // pred_region
          %508 = vsyncadd [#allocation8], 0
          %s509 = sshll.u32 %s7, 4
          %s510 = int_to_ptr.hbm [resolvable:$true] %s509
          %s511 = sshll.u32 [#allocation7], 4
          %s512 = int_to_ptr.vmem [resolvable:$true] %s511
          %517 = dma.hbm_to_vmem [thread:$0]  %s510, 5760, %s512, [#allocation8], 128, 128, 8
        $region40: #{network_forward.1} parent=11 // pred_fallthru
          _
        // Predicated region
        $region41: #{network_forward.1} parent=11 // pred_check
          %p518 = pneg %p224
        $region42: #{network_forward.1} parent=11 // pred_check_branch
          %520 = sbr.rel (%p518) target = $region44
        $region43: #{network_forward.1} parent=11 // pred_region
          _
        $region44: #{network_forward.1} parent=11 // pred_fallthru
          _
        // Predicated region
        $region45: #{network_forward.1} parent=11 // pred_check
          %p521 = pneg %p245
        $region46: #{network_forward.1} parent=11 // pred_check_branch
          %523 = sbr.rel (%p521) target = $region48
        $region47: #{network_forward.1} parent=11 // pred_region
          _
        $region48: #{network_forward.1} parent=11 // pred_fallthru
          _
        // Predicated region
        $region49: #{network_forward.1} parent=11 // pred_check
          %p524 = pneg %p266
        $region50: #{network_forward.1} parent=11 // pred_check_branch
          %526 = sbr.rel (%p524) target = $region52
        $region51: #{network_forward.1} parent=11 // pred_region
          _
        $region52: #{network_forward.1} parent=11 // pred_fallthru
          _
        // Predicated region
        $region53: #{network_forward.1} parent=11 // pred_check
          %p527 = pneg %p287
        $region54: #{network_forward.1} parent=11 // pred_check_branch
          %529 = sbr.rel (%p527) target = $region56
        $region55: #{network_forward.1} parent=11 // pred_region
          _
        $region56: #{network_forward.1} parent=11 // pred_fallthru
          _
        // Predicated region
        $region57: #{network_forward.1} parent=11 // pred_check
          %p530 = pneg %p308
        $region58: #{network_forward.1} parent=11 // pred_check_branch
          %532 = sbr.rel (%p530) target = $region60
        $region59: #{network_forward.1} parent=11 // pred_region
          _
        $region60: #{network_forward.1} parent=11 // pred_fallthru
          _
        // Predicated region
        $region61: #{network_forward.1} parent=11 // pred_check
          %p533 = pneg %p329
        $region62: #{network_forward.1} parent=11 // pred_check_branch
          %535 = sbr.rel (%p533) target = $region64
        $region63: #{network_forward.1} parent=11 // pred_region
          _
        $region64: #{network_forward.1} parent=11 // pred_fallthru
          _
        // Predicated region
        $region65: #{network_forward.1} parent=11 // pred_check
          %p536 = pneg %p350
        $region66: #{network_forward.1} parent=11 // pred_check_branch
          %538 = sbr.rel (%p536) target = $region68
        $region67: #{network_forward.1} parent=11 // pred_region
          _
        $region68: #{network_forward.1} parent=11 // pred_fallthru
          _
        // Predicated region
        $region69: #{network_forward.1} parent=11 // pred_check
          %p539 = pneg %p371
        $region70: #{network_forward.1} parent=11 // pred_check_branch
          %541 = sbr.rel (%p539) target = $region72
        $region71: #{network_forward.1} parent=11 // pred_region
          _
        $region72: #{network_forward.1} parent=11 // pred_fallthru
          _
        // Predicated region
        $region73: #{network_forward.1} parent=11 // pred_check
          %p542 = pneg %p392
        $region74: #{network_forward.1} parent=11 // pred_check_branch
          %544 = sbr.rel (%p542) target = $region76
        $region75: #{network_forward.1} parent=11 // pred_region
          _
        $region76: #{network_forward.1} parent=11 // pred_fallthru
          _
        // Predicated region
        $region77: #{network_forward.1} parent=11 // pred_check
          %p545 = pneg %p413
        $region78: #{network_forward.1} parent=11 // pred_check_branch
          %547 = sbr.rel (%p545) target = $region80
        $region79: #{network_forward.1} parent=11 // pred_region
          _
        $region80: #{network_forward.1} parent=11 // pred_fallthru
          _
        // Predicated region
        $region81: #{network_forward.1} parent=11 // pred_check
          %p548 = pneg %p434
        $region82: #{network_forward.1} parent=11 // pred_check_branch
          %550 = sbr.rel (%p548) target = $region84
        $region83: #{network_forward.1} parent=11 // pred_region
          _
        $region84: #{network_forward.1} parent=11 // pred_fallthru
          _
      $region12: #{network_forward.1} parent=5 // pred_fallthru
        _
      %p551 = scmp.lt.s32.totalorder %s30, 2
      // Predicated region
      $region85: #{network_forward.1} parent=5 // pred_check
        %p552 = pneg %p551
      $region86: #{network_forward.1} parent=5 // pred_check_branch
        %554 = sbr.rel (%p552) target = $region88
      $region87: #{network_forward.1} parent=5 // pred_region
        // Predicated region
        $region89: #{network_forward.1} parent=87 // pred_check
          %p555 = pneg %p50
        $region90: #{network_forward.1} parent=87 // pred_check_branch
          %557 = sbr.rel (%p555) target = $region92
        $region91: #{network_forward.1} parent=87 // pred_region
          %p558 = scmp.lt.s32.totalorder %s30, 1
          %s559 = scalar_select %p558, %s30, 1
          %s560 = smul.addr %s559, 4
          %s561 = smul.addr %s560, 8
          %s562 = scalar_lea.vmem %s0, %s561
        $region92: #{network_forward.1} parent=87 // pred_fallthru
          _
      $region88: #{network_forward.1} parent=5 // pred_fallthru
        _
      %p563 = scmp.le.s32.totalorder 1, %s30
      %p564 = scmp.lt.s32.totalorder %s30, 3
      %p565 = pnand %p563, %p564
      %p566 = pneg %p565
      // Predicated region
      $region93: #{network_forward.1} parent=5 // pred_check
        _
      $region94: #{network_forward.1} parent=5 // pred_check_branch
        %568 = sbr.rel (%p565) target = $region96
      $region95: #{network_forward.1} parent=5 // pred_region
        %s569 = ssub.s32 %s30, 1
        // Predicated region
        $region97: #{network_forward.1} parent=95 // pred_check
          %p570 = pneg %p77
        $region98: #{network_forward.1} parent=95 // pred_check_branch
          %572 = sbr.rel (%p570) target = $region100
        $region99: #{network_forward.1} parent=95 // pred_region
          %574 = dma.done [#allocation5], 5120
        $region100: #{network_forward.1} parent=95 // pred_fallthru
          _
        // Predicated region
        $region101: #{network_forward.1} parent=95 // pred_check
          %p575 = pneg %p203
        $region102: #{network_forward.1} parent=95 // pred_check_branch
          %577 = sbr.rel (%p575) target = $region104
        $region103: #{network_forward.1} parent=95 // pred_region
          %579 = dma.done [#allocation8], 5760
        $region104: #{network_forward.1} parent=95 // pred_fallthru
          _
        %p580 = scmp.lt.s32.totalorder %s35, 1
        %s581 = scalar_select %p580, %s35, 1
        %s582 = smul.addr %s581, 4
        %s583 = smul.addr %s582, 8
        %s584 = scalar_lea.vmem %s0, %s583
        %p585 = pneg %p56
        %p586 = pneg %p53
        %p587 = pneg %p77
        %p588 = pneg %p74
        %p589 = pneg %p98
        %p590 = pneg %p95
        %p591 = pneg %p119
        %p592 = pneg %p116
        %p593 = pneg %p140
        %p594 = pneg %p137
        %p595 = pneg %p161
        %p596 = pneg %p158
        %p597 = pneg %p182
        %p598 = pneg %p179
        %p599 = pneg %p203
        %p600 = pneg %p200
        %p601 = pneg %p224
        %p602 = pneg %p221
        %p603 = pneg %p245
        %p604 = pneg %p242
        %p605 = pneg %p266
        %p606 = pneg %p263
        %p607 = pneg %p287
        %p608 = pneg %p284
        %p609 = pneg %p308
        %p610 = pneg %p305
        %p611 = pneg %p329
        %p612 = pneg %p326
        %p613 = pneg %p350
        %p614 = pneg %p347
        %p615 = pneg %p371
        %p616 = pneg %p368
        %p617 = pneg %p392
        %p618 = pneg %p389
        %p619 = pneg %p413
        %p620 = pneg %p410
        %p621 = pneg %p434
        %p622 = pneg %p431
        %p623 = pneg %p460
        %p624 = pneg %p457
        %s625 = sand.u32 %s447, 1
        %s626 = scalar_lea.sflag [#allocation6], %s625
        %s627 = sand.u32 %s447, 1
        %s628 = scalar_lea.vmem [#allocation9], %s627
        %p629 = scmp.lt.s32.totalorder %s35, 1
        %s630 = scalar_select %p629, %s35, 1
        %s631 = smul.addr %s630, 4
        %s632 = smul.addr %s631, 8
        %s633 = scalar_lea.vmem %s0, %s632
        %v634 = vld [vmem:[%s633] sm:$0xff]
        %v635 = vld [vmem:[%s633 + $0x8] sm:$0xff]
        %v636 = vld [vmem:[%s633 + $0x10] sm:$0xff]
        %v637 = vld [vmem:[#allocation4] sm:$0xff]
        %v638 = vld [vmem:[#allocation4 + $0x8] sm:$0xff]
        %v639 = vld [vmem:[#allocation4 + $0x10] sm:$0xff]
        %v640 = vld [vmem:[#allocation4 + $0x18] sm:$0xff]
        %v641 = vld [vmem:[#allocation4 + $0x20] sm:$0xff]
        %v642 = vld [vmem:[#allocation4 + $0x28] sm:$0xff]
        %v643 = vld [vmem:[#allocation4 + $0x30] sm:$0xf]
        %v644 = vld [vmem:[#allocation4 + $0x38] sm:$0xf]
        %v645 = vld [vmem:[%s633 + $0x1] sm:$0xff]
        %v646 = vld [vmem:[%s633 + $0x9] sm:$0xff]
        %v647 = vld [vmem:[%s633 + $0x11] sm:$0xff]
        %s648 = scalar_lea.vmem [#allocation4], 64
        %v649 = vld [vmem:[%s648] sm:$0xff]
        %v650 = vld [vmem:[%s648 + $0x8] sm:$0xff]
        %v651 = vld [vmem:[%s648 + $0x10] sm:$0xff]
        %v652 = vld [vmem:[%s648 + $0x18] sm:$0xff]
        %v653 = vld [vmem:[%s648 + $0x20] sm:$0xff]
        %v654 = vld [vmem:[%s648 + $0x28] sm:$0xff]
        %v655 = vld [vmem:[%s648 + $0x30] sm:$0xf]
        %v656 = vld [vmem:[%s648 + $0x38] sm:$0xf]
        %vm657 = vcmask 228352
        %v659 = vsel %vm657, %v645, 0
        %v662 = vsel %vm657, %v646, 0
        %v665 = vsel %vm657, %v647, 0
        %vm667 = vcmask 1043456
        %v669 = vsel %vm667, %v655, 0
        %v672 = vsel %vm667, %v656, 0
        %674 = vmatpush.msra.mxu0 0.0
        %675 = vmatpush.msra.mxu0 0.0
        %676 = vmatpush.msra.mxu0 0.0
        %677 = vmatpush.msra.mxu0 0.0
        %678 = vmatpush.msra.mxu0 0.0
        %679 = vmatpush.msra.mxu0 0.0
        %680 = vmatpush.msra.mxu0 0.0
        %681 = vmatpush.msra.mxu0 0.0
        %682 = vmatpush.msra.mxu0 0.0
        %683 = vmatpush.msra.mxu0 0.0
        %684 = vmatpush.msra.mxu0 0.0
        %685 = vmatpush.msra.mxu0 0.0
        %686 = vmatpush.msra.mxu0 %v669
        %687 = vmatpush.msra.mxu0 %v653
        %688 = vmatpush.msra.mxu0 %v651
        %689 = vmatpush.msra.mxu0 %v649
        %690 = vmatmul.f32.gmra.mxu0 %v659
        %v691 = vpop.f32.mrf.mxu0
        %v692 = vadd.f32 0.0, %v691
        %693 = vmatmul.f32.gmra.mxu0 %v662
        %v694 = vpop.f32.mrf.mxu0
        %v695 = vadd.f32 0.0, %v694
        %696 = vmatmul.f32.gmra.mxu0 %v665
        %v697 = vpop.f32.mrf.mxu0
        %v698 = vadd.f32 0.0, %v697
        %699 = vdwg.mxu0
        %700 = vmatpush.msra.mxu0 0.0
        %701 = vmatpush.msra.mxu0 0.0
        %702 = vmatpush.msra.mxu0 0.0
        %703 = vmatpush.msra.mxu0 0.0
        %704 = vmatpush.msra.mxu0 0.0
        %705 = vmatpush.msra.mxu0 0.0
        %706 = vmatpush.msra.mxu0 0.0
        %707 = vmatpush.msra.mxu0 0.0
        %708 = vmatpush.msra.mxu0 0.0
        %709 = vmatpush.msra.mxu0 0.0
        %710 = vmatpush.msra.mxu0 0.0
        %711 = vmatpush.msra.mxu0 0.0
        %712 = vmatpush.msra.mxu0 %v672
        %713 = vmatpush.msra.mxu0 %v654
        %714 = vmatpush.msra.mxu0 %v652
        %715 = vmatpush.msra.mxu0 %v650
        %716 = vmatmul.f32.gmra.mxu0 %v659
        %v717 = vpop.f32.mrf.mxu0
        %v718 = vadd.f32 0.0, %v717
        %719 = vmatmul.f32.gmra.mxu0 %v662
        %v720 = vpop.f32.mrf.mxu0
        %v721 = vadd.f32 0.0, %v720
        %722 = vmatmul.f32.gmra.mxu0 %v665
        %v723 = vpop.f32.mrf.mxu0
        %v724 = vadd.f32 0.0, %v723
        %725 = vdwg.mxu0
        %v727 = vsel %vm657, %v634, 0
        %v730 = vsel %vm657, %v635, 0
        %v733 = vsel %vm657, %v636, 0
        %v736 = vsel %vm667, %v643, 0
        %v739 = vsel %vm667, %v644, 0
        %741 = vmatpush.msra.mxu0 0.0
        %742 = vmatpush.msra.mxu0 0.0
        %743 = vmatpush.msra.mxu0 0.0
        %744 = vmatpush.msra.mxu0 0.0
        %745 = vmatpush.msra.mxu0 0.0
        %746 = vmatpush.msra.mxu0 0.0
        %747 = vmatpush.msra.mxu0 0.0
        %748 = vmatpush.msra.mxu0 0.0
        %749 = vmatpush.msra.mxu0 0.0
        %750 = vmatpush.msra.mxu0 0.0
        %751 = vmatpush.msra.mxu0 0.0
        %752 = vmatpush.msra.mxu0 0.0
        %753 = vmatpush.msra.mxu0 %v736
        %754 = vmatpush.msra.mxu0 %v641
        %755 = vmatpush.msra.mxu0 %v639
        %756 = vmatpush.msra.mxu0 %v637
        %757 = vmatmul.f32.gmra.mxu0 %v727
        %v758 = vpop.f32.mrf.mxu0
        %v759 = vadd.f32 %v692, %v758
        %760 = vmatmul.f32.gmra.mxu0 %v730
        %v761 = vpop.f32.mrf.mxu0
        %v762 = vadd.f32 %v695, %v761
        %763 = vmatmul.f32.gmra.mxu0 %v733
        %v764 = vpop.f32.mrf.mxu0
        %v765 = vadd.f32 %v698, %v764
        %766 = vdwg.mxu0
        %767 = vmatpush.msra.mxu0 0.0
        %768 = vmatpush.msra.mxu0 0.0
        %769 = vmatpush.msra.mxu0 0.0
        %770 = vmatpush.msra.mxu0 0.0
        %771 = vmatpush.msra.mxu0 0.0
        %772 = vmatpush.msra.mxu0 0.0
        %773 = vmatpush.msra.mxu0 0.0
        %774 = vmatpush.msra.mxu0 0.0
        %775 = vmatpush.msra.mxu0 0.0
        %776 = vmatpush.msra.mxu0 0.0
        %777 = vmatpush.msra.mxu0 0.0
        %778 = vmatpush.msra.mxu0 0.0
        %779 = vmatpush.msra.mxu0 %v739
        %780 = vmatpush.msra.mxu0 %v642
        %781 = vmatpush.msra.mxu0 %v640
        %782 = vmatpush.msra.mxu0 %v638
        %783 = vmatmul.f32.gmra.mxu0 %v727
        %v784 = vpop.f32.mrf.mxu0
        %v785 = vadd.f32 %v718, %v784
        %786 = vmatmul.f32.gmra.mxu0 %v730
        %v787 = vpop.f32.mrf.mxu0
        %v788 = vadd.f32 %v721, %v787
        %789 = vmatmul.f32.gmra.mxu0 %v733
        %v790 = vpop.f32.mrf.mxu0
        %v791 = vadd.f32 %v724, %v790
        %792 = vdwg.mxu0
        %v793 = vld [vmem:[%s633 + $0x2] sm:$0xff]
        %v794 = vld [vmem:[%s633 + $0xa] sm:$0xff]
        %v795 = vld [vmem:[%s633 + $0x12] sm:$0xff]
        %s796 = scalar_lea.vmem [#allocation4], 128
        %v797 = vld [vmem:[%s796] sm:$0xff]
        %v798 = vld [vmem:[%s796 + $0x8] sm:$0xff]
        %v799 = vld [vmem:[%s796 + $0x10] sm:$0xff]
        %v800 = vld [vmem:[%s796 + $0x18] sm:$0xff]
        %v801 = vld [vmem:[%s796 + $0x20] sm:$0xff]
        %v802 = vld [vmem:[%s796 + $0x28] sm:$0xff]
        %v803 = vld [vmem:[%s796 + $0x30] sm:$0xf]
        %v804 = vld [vmem:[%s796 + $0x38] sm:$0xf]
        %v806 = vsel %vm657, %v793, 0
        %v809 = vsel %vm657, %v794, 0
        %v812 = vsel %vm657, %v795, 0
        %v815 = vsel %vm667, %v803, 0
        %v818 = vsel %vm667, %v804, 0
        %820 = vmatpush.msra.mxu0 0.0
        %821 = vmatpush.msra.mxu0 0.0
        %822 = vmatpush.msra.mxu0 0.0
        %823 = vmatpush.msra.mxu0 0.0
        %824 = vmatpush.msra.mxu0 0.0
        %825 = vmatpush.msra.mxu0 0.0
        %826 = vmatpush.msra.mxu0 0.0
        %827 = vmatpush.msra.mxu0 0.0
        %828 = vmatpush.msra.mxu0 0.0
        %829 = vmatpush.msra.mxu0 0.0
        %830 = vmatpush.msra.mxu0 0.0
        %831 = vmatpush.msra.mxu0 0.0
        %832 = vmatpush.msra.mxu0 %v815
        %833 = vmatpush.msra.mxu0 %v801
        %834 = vmatpush.msra.mxu0 %v799
        %835 = vmatpush.msra.mxu0 %v797
        %836 = vmatmul.f32.gmra.mxu0 %v806
        %v837 = vpop.f32.mrf.mxu0
        %v838 = vadd.f32 0.0, %v837
        %839 = vmatmul.f32.gmra.mxu0 %v809
        %v840 = vpop.f32.mrf.mxu0
        %v841 = vadd.f32 0.0, %v840
        %842 = vmatmul.f32.gmra.mxu0 %v812
        %v843 = vpop.f32.mrf.mxu0
        %v844 = vadd.f32 0.0, %v843
        %845 = vdwg.mxu0
        %846 = vmatpush.msra.mxu0 0.0
        %847 = vmatpush.msra.mxu0 0.0
        %848 = vmatpush.msra.mxu0 0.0
        %849 = vmatpush.msra.mxu0 0.0
        %850 = vmatpush.msra.mxu0 0.0
        %851 = vmatpush.msra.mxu0 0.0
        %852 = vmatpush.msra.mxu0 0.0
        %853 = vmatpush.msra.mxu0 0.0
        %854 = vmatpush.msra.mxu0 0.0
        %855 = vmatpush.msra.mxu0 0.0
        %856 = vmatpush.msra.mxu0 0.0
        %857 = vmatpush.msra.mxu0 0.0
        %858 = vmatpush.msra.mxu0 %v818
        %859 = vmatpush.msra.mxu0 %v802
        %860 = vmatpush.msra.mxu0 %v800
        %861 = vmatpush.msra.mxu0 %v798
        %862 = vmatmul.f32.gmra.mxu0 %v806
        %v863 = vpop.f32.mrf.mxu0
        %v864 = vadd.f32 0.0, %v863
        %865 = vmatmul.f32.gmra.mxu0 %v809
        %v866 = vpop.f32.mrf.mxu0
        %v867 = vadd.f32 0.0, %v866
        %868 = vmatmul.f32.gmra.mxu0 %v812
        %v869 = vpop.f32.mrf.mxu0
        %v870 = vadd.f32 0.0, %v869
        %871 = vdwg.mxu0
        %v872 = vadd.f32 %v759, %v838
        %v873 = vadd.f32 %v785, %v864
        %v874 = vadd.f32 %v762, %v841
        %v875 = vadd.f32 %v788, %v867
        %v876 = vadd.f32 %v765, %v844
        %v877 = vadd.f32 %v791, %v870
        %v878 = vld [vmem:[%s633 + $0x3] sm:$0xff]
        %v879 = vld [vmem:[%s633 + $0xb] sm:$0xff]
        %v880 = vld [vmem:[%s633 + $0x13] sm:$0xff]
        %s881 = scalar_lea.vmem [#allocation4], 192
        %v882 = vld [vmem:[%s881] sm:$0xff]
        %v883 = vld [vmem:[%s881 + $0x8] sm:$0xff]
        %v884 = vld [vmem:[%s881 + $0x10] sm:$0xff]
        %v885 = vld [vmem:[%s881 + $0x18] sm:$0xff]
        %v886 = vld [vmem:[%s881 + $0x20] sm:$0xff]
        %v887 = vld [vmem:[%s881 + $0x28] sm:$0xff]
        %v888 = vld [vmem:[%s881 + $0x30] sm:$0xf]
        %v889 = vld [vmem:[%s881 + $0x38] sm:$0xf]
        %v891 = vsel %vm657, %v878, 0
        %v894 = vsel %vm657, %v879, 0
        %v897 = vsel %vm657, %v880, 0
        %v900 = vsel %vm667, %v888, 0
        %v903 = vsel %vm667, %v889, 0
        %905 = vmatpush.msra.mxu0 0.0
        %906 = vmatpush.msra.mxu0 0.0
        %907 = vmatpush.msra.mxu0 0.0
        %908 = vmatpush.msra.mxu0 0.0
        %909 = vmatpush.msra.mxu0 0.0
        %910 = vmatpush.msra.mxu0 0.0
        %911 = vmatpush.msra.mxu0 0.0
        %912 = vmatpush.msra.mxu0 0.0
        %913 = vmatpush.msra.mxu0 0.0
        %914 = vmatpush.msra.mxu0 0.0
        %915 = vmatpush.msra.mxu0 0.0
        %916 = vmatpush.msra.mxu0 0.0
        %917 = vmatpush.msra.mxu0 %v900
        %918 = vmatpush.msra.mxu0 %v886
        %919 = vmatpush.msra.mxu0 %v884
        %920 = vmatpush.msra.mxu0 %v882
        %921 = vmatmul.f32.gmra.mxu0 %v891
        %v922 = vpop.f32.mrf.mxu0
        %v923 = vadd.f32 0.0, %v922
        %924 = vmatmul.f32.gmra.mxu0 %v894
        %v925 = vpop.f32.mrf.mxu0
        %v926 = vadd.f32 0.0, %v925
        %927 = vmatmul.f32.gmra.mxu0 %v897
        %v928 = vpop.f32.mrf.mxu0
        %v929 = vadd.f32 0.0, %v928
        %930 = vdwg.mxu0
        %931 = vmatpush.msra.mxu0 0.0
        %932 = vmatpush.msra.mxu0 0.0
        %933 = vmatpush.msra.mxu0 0.0
        %934 = vmatpush.msra.mxu0 0.0
        %935 = vmatpush.msra.mxu0 0.0
        %936 = vmatpush.msra.mxu0 0.0
        %937 = vmatpush.msra.mxu0 0.0
        %938 = vmatpush.msra.mxu0 0.0
        %939 = vmatpush.msra.mxu0 0.0
        %940 = vmatpush.msra.mxu0 0.0
        %941 = vmatpush.msra.mxu0 0.0
        %942 = vmatpush.msra.mxu0 0.0
        %943 = vmatpush.msra.mxu0 %v903
        %944 = vmatpush.msra.mxu0 %v887
        %945 = vmatpush.msra.mxu0 %v885
        %946 = vmatpush.msra.mxu0 %v883
        %947 = vmatmul.f32.gmra.mxu0 %v891
        %v948 = vpop.f32.mrf.mxu0
        %v949 = vadd.f32 0.0, %v948
        %950 = vmatmul.f32.gmra.mxu0 %v894
        %v951 = vpop.f32.mrf.mxu0
        %v952 = vadd.f32 0.0, %v951
        %953 = vmatmul.f32.gmra.mxu0 %v897
        %v954 = vpop.f32.mrf.mxu0
        %v955 = vadd.f32 0.0, %v954
        %956 = vdwg.mxu0
        %v957 = vadd.f32 %v872, %v923
        %v958 = vadd.f32 %v873, %v949
        %v959 = vadd.f32 %v874, %v926
        %v960 = vadd.f32 %v875, %v952
        %v961 = vadd.f32 %v876, %v929
        %v962 = vadd.f32 %v877, %v955
        %v963 = vld [vmem:[%s633 + $0x4] sm:$0xff]
        %v964 = vld [vmem:[%s633 + $0xc] sm:$0xff]
        %v965 = vld [vmem:[%s633 + $0x14] sm:$0xff]
        %s966 = scalar_lea.vmem [#allocation4], 256
        %v967 = vld [vmem:[%s966] sm:$0xff]
        %v968 = vld [vmem:[%s966 + $0x8] sm:$0xff]
        %v969 = vld [vmem:[%s966 + $0x10] sm:$0xff]
        %v970 = vld [vmem:[%s966 + $0x18] sm:$0xff]
        %v971 = vld [vmem:[%s966 + $0x20] sm:$0xff]
        %v972 = vld [vmem:[%s966 + $0x28] sm:$0xff]
        %v973 = vld [vmem:[%s966 + $0x30] sm:$0xf]
        %v974 = vld [vmem:[%s966 + $0x38] sm:$0xf]
        %v976 = vsel %vm657, %v963, 0
        %v979 = vsel %vm657, %v964, 0
        %v982 = vsel %vm657, %v965, 0
        %v985 = vsel %vm667, %v973, 0
        %v988 = vsel %vm667, %v974, 0
        %990 = vmatpush.msra.mxu0 0.0
        %991 = vmatpush.msra.mxu0 0.0
        %992 = vmatpush.msra.mxu0 0.0
        %993 = vmatpush.msra.mxu0 0.0
        %994 = vmatpush.msra.mxu0 0.0
        %995 = vmatpush.msra.mxu0 0.0
        %996 = vmatpush.msra.mxu0 0.0
        %997 = vmatpush.msra.mxu0 0.0
        %998 = vmatpush.msra.mxu0 0.0
        %999 = vmatpush.msra.mxu0 0.0
        %1000 = vmatpush.msra.mxu0 0.0
        %1001 = vmatpush.msra.mxu0 0.0
        %1002 = vmatpush.msra.mxu0 %v985
        %1003 = vmatpush.msra.mxu0 %v971
        %1004 = vmatpush.msra.mxu0 %v969
        %1005 = vmatpush.msra.mxu0 %v967
        %1006 = vmatmul.f32.gmra.mxu0 %v976
        %v1007 = vpop.f32.mrf.mxu0
        %v1008 = vadd.f32 0.0, %v1007
        %1009 = vmatmul.f32.gmra.mxu0 %v979
        %v1010 = vpop.f32.mrf.mxu0
        %v1011 = vadd.f32 0.0, %v1010
        %1012 = vmatmul.f32.gmra.mxu0 %v982
        %v1013 = vpop.f32.mrf.mxu0
        %v1014 = vadd.f32 0.0, %v1013
        %1015 = vdwg.mxu0
        %1016 = vmatpush.msra.mxu0 0.0
        %1017 = vmatpush.msra.mxu0 0.0
        %1018 = vmatpush.msra.mxu0 0.0
        %1019 = vmatpush.msra.mxu0 0.0
        %1020 = vmatpush.msra.mxu0 0.0
        %1021 = vmatpush.msra.mxu0 0.0
        %1022 = vmatpush.msra.mxu0 0.0
        %1023 = vmatpush.msra.mxu0 0.0
        %1024 = vmatpush.msra.mxu0 0.0
        %1025 = vmatpush.msra.mxu0 0.0
        %1026 = vmatpush.msra.mxu0 0.0
        %1027 = vmatpush.msra.mxu0 0.0
        %1028 = vmatpush.msra.mxu0 %v988
        %1029 = vmatpush.msra.mxu0 %v972
        %1030 = vmatpush.msra.mxu0 %v970
        %1031 = vmatpush.msra.mxu0 %v968
        %1032 = vmatmul.f32.gmra.mxu0 %v976
        %v1033 = vpop.f32.mrf.mxu0
        %v1034 = vadd.f32 0.0, %v1033
        %1035 = vmatmul.f32.gmra.mxu0 %v979
        %v1036 = vpop.f32.mrf.mxu0
        %v1037 = vadd.f32 0.0, %v1036
        %1038 = vmatmul.f32.gmra.mxu0 %v982
        %v1039 = vpop.f32.mrf.mxu0
        %v1040 = vadd.f32 0.0, %v1039
        %1041 = vdwg.mxu0
        %v1042 = vadd.f32 %v957, %v1008
        %v1043 = vadd.f32 %v958, %v1034
        %v1044 = vadd.f32 %v959, %v1011
        %v1045 = vadd.f32 %v960, %v1037
        %v1046 = vadd.f32 %v961, %v1014
        %v1047 = vadd.f32 %v962, %v1040
        %v1048 = vld [vmem:[%s2] sm:$0x3]
        %v1050 = vperm.slane %v1048, 0
        %v1051 = vperm.slane %v1048, 1
        %v1054 = vadd.f32 %v1042, %v1050
        %v1055 = vadd.f32 %v1043, %v1051
        %v1056 = vadd.f32 %v1044, %v1050
        %v1057 = vadd.f32 %v1045, %v1051
        %v1058 = vadd.f32 %v1046, %v1050
        %v1059 = vadd.f32 %v1047, %v1051
        %v1060 = vmax.f32 %v1054, 0.0
        %v1061 = vmax.f32 %v1055, 0.0
        %v1062 = vmax.f32 %v1056, 0.0
        %v1063 = vmax.f32 %v1057, 0.0
        %v1064 = vmax.f32 %v1058, 0.0
        %v1065 = vmax.f32 %v1059, 0.0
        %v1066 = vld [vmem:[%s3] sm:$0xff]
        %v1067 = vld [vmem:[%s3 + $0x8] sm:$0xf]
        %vm1068 = vcmask 195584
        %v1070 = vsel %vm1068, %v1066, 0
        %v1073 = vsel %vm1068, %v1067, 0
        %1075 = vmatpush.msra.mxu0 0.0
        %1076 = vmatpush.msra.mxu0 0.0
        %1077 = vmatpush.msra.mxu0 0.0
        %1078 = vmatpush.msra.mxu0 0.0
        %1079 = vmatpush.msra.mxu0 0.0
        %1080 = vmatpush.msra.mxu0 0.0
        %1081 = vmatpush.msra.mxu0 0.0
        %1082 = vmatpush.msra.mxu0 0.0
        %1083 = vmatpush.msra.mxu0 0.0
        %1084 = vmatpush.msra.mxu0 0.0
        %1085 = vmatpush.msra.mxu0 0.0
        %1086 = vmatpush.msra.mxu0 0.0
        %1087 = vmatpush.msra.mxu0 0.0
        %1088 = vmatpush.msra.mxu0 %v1064
        %1089 = vmatpush.msra.mxu0 %v1062
        %1090 = vmatpush.msra.mxu0 %v1060
        %1091 = vmatmul.f32.gmra.mxu0 %v1070
        %v1092 = vpop.f32.mrf.mxu0
        %v1093 = vadd.f32 0.0, %v1092
        %1094 = vmatmul.f32.gmra.mxu0 %v1073
        %v1095 = vpop.f32.mrf.mxu0
        %v1096 = vadd.f32 0.0, %v1095
        %1097 = vdwg.mxu0
        %1098 = vmatpush.msra.mxu0 0.0
        %1099 = vmatpush.msra.mxu0 0.0
        %1100 = vmatpush.msra.mxu0 0.0
        %1101 = vmatpush.msra.mxu0 0.0
        %1102 = vmatpush.msra.mxu0 0.0
        %1103 = vmatpush.msra.mxu0 0.0
        %1104 = vmatpush.msra.mxu0 0.0
        %1105 = vmatpush.msra.mxu0 0.0
        %1106 = vmatpush.msra.mxu0 0.0
        %1107 = vmatpush.msra.mxu0 0.0
        %1108 = vmatpush.msra.mxu0 0.0
        %1109 = vmatpush.msra.mxu0 0.0
        %1110 = vmatpush.msra.mxu0 0.0
        %1111 = vmatpush.msra.mxu0 %v1065
        %1112 = vmatpush.msra.mxu0 %v1063
        %1113 = vmatpush.msra.mxu0 %v1061
        %1114 = vmatmul.f32.gmra.mxu0 %v1070
        %v1115 = vpop.f32.mrf.mxu0
        %v1116 = vadd.f32 0.0, %v1115
        %1117 = vmatmul.f32.gmra.mxu0 %v1073
        %v1118 = vpop.f32.mrf.mxu0
        %v1119 = vadd.f32 0.0, %v1118
        %1120 = vdwg.mxu0
        %v1121 = vld [vmem:[%s4] sm:$0xff]
        %v1122 = vld [vmem:[%s4 + $0x8] sm:$0xf]
        %v1124 = vsel %vm1068, %v1121, 0
        %v1127 = vsel %vm1068, %v1122, 0
        %1129 = vmatpush.msra.mxu0 0.0
        %1130 = vmatpush.msra.mxu0 0.0
        %1131 = vmatpush.msra.mxu0 0.0
        %1132 = vmatpush.msra.mxu0 0.0
        %1133 = vmatpush.msra.mxu0 0.0
        %1134 = vmatpush.msra.mxu0 0.0
        %1135 = vmatpush.msra.mxu0 0.0
        %1136 = vmatpush.msra.mxu0 0.0
        %1137 = vmatpush.msra.mxu0 0.0
        %1138 = vmatpush.msra.mxu0 0.0
        %1139 = vmatpush.msra.mxu0 0.0
        %1140 = vmatpush.msra.mxu0 0.0
        %1141 = vmatpush.msra.mxu0 0.0
        %1142 = vmatpush.msra.mxu0 %v1064
        %1143 = vmatpush.msra.mxu0 %v1062
        %1144 = vmatpush.msra.mxu0 %v1060
        %1145 = vmatmul.f32.gmra.mxu0 %v1124
        %v1146 = vpop.f32.mrf.mxu0
        %v1147 = vadd.f32 0.0, %v1146
        %1148 = vmatmul.f32.gmra.mxu0 %v1127
        %v1149 = vpop.f32.mrf.mxu0
        %v1150 = vadd.f32 0.0, %v1149
        %1151 = vdwg.mxu0
        %1152 = vmatpush.msra.mxu0 0.0
        %1153 = vmatpush.msra.mxu0 0.0
        %1154 = vmatpush.msra.mxu0 0.0
        %1155 = vmatpush.msra.mxu0 0.0
        %1156 = vmatpush.msra.mxu0 0.0
        %1157 = vmatpush.msra.mxu0 0.0
        %1158 = vmatpush.msra.mxu0 0.0
        %1159 = vmatpush.msra.mxu0 0.0
        %1160 = vmatpush.msra.mxu0 0.0
        %1161 = vmatpush.msra.mxu0 0.0
        %1162 = vmatpush.msra.mxu0 0.0
        %1163 = vmatpush.msra.mxu0 0.0
        %1164 = vmatpush.msra.mxu0 0.0
        %1165 = vmatpush.msra.mxu0 %v1065
        %1166 = vmatpush.msra.mxu0 %v1063
        %1167 = vmatpush.msra.mxu0 %v1061
        %1168 = vmatmul.f32.gmra.mxu0 %v1124
        %v1169 = vpop.f32.mrf.mxu0
        %v1170 = vadd.f32 0.0, %v1169
        %1171 = vmatmul.f32.gmra.mxu0 %v1127
        %v1172 = vpop.f32.mrf.mxu0
        %v1173 = vadd.f32 0.0, %v1172
        %1174 = vdwg.mxu0
        %v1175 = vmax.f32 %v1093, %v1147
        %v1176 = vmax.f32 %v1116, %v1170
        %v1177 = vmax.f32 %v1096, %v1150
        %v1178 = vmax.f32 %v1119, %v1173
        %v1179 = vld [vmem:[%s5] sm:$0xff]
        %v1180 = vld [vmem:[%s5 + $0x8] sm:$0xff]
        %v1181 = vld [vmem:[%s5 + $0x10] sm:$0xff]
        %v1182 = vld [vmem:[%s5 + $0x18] sm:$0xff]
        %v1183 = vld [vmem:[%s5 + $0x20] sm:$0xff]
        %v1184 = vld [vmem:[%s5 + $0x28] sm:$0xff]
        %v1185 = vld [vmem:[%s5 + $0x30] sm:$0xff]
        %v1186 = vld [vmem:[%s5 + $0x38] sm:$0xff]
        %v1187 = vld [vmem:[%s5 + $0x40] sm:$0xff]
        %v1188 = vld [vmem:[%s5 + $0x48] sm:$0xff]
        %v1189 = vld [vmem:[%s5 + $0x50] sm:$0xff]
        %v1190 = vld [vmem:[%s5 + $0x58] sm:$0xff]
        %v1191 = vld [vmem:[%s5 + $0x60] sm:$0xff]
        %v1192 = vld [vmem:[%s5 + $0x68] sm:$0xff]
        %v1193 = vld [vmem:[%s5 + $0x70] sm:$0xff]
        %v1194 = vld [vmem:[%s5 + $0x78] sm:$0xff]
        %v1195 = vld [vmem:[%s5 + $0x80] sm:$0xff]
        %v1196 = vld [vmem:[%s5 + $0x88] sm:$0xff]
        %vm1197 = vcmask 130048
        %v1199 = vsel %vm1197, %v1176, 0
        %v1202 = vsel %vm1197, %v1178, 0
        %1204 = vmatpush.msra.mxu0 %v1194
        %1205 = vmatpush.msra.mxu0 %v1193
        %1206 = vmatpush.msra.mxu0 %v1192
        %1207 = vmatpush.msra.mxu0 %v1191
        %1208 = vmatpush.msra.mxu0 %v1190
        %1209 = vmatpush.msra.mxu0 %v1189
        %1210 = vmatpush.msra.mxu0 %v1188
        %1211 = vmatpush.msra.mxu0 %v1187
        %1212 = vmatpush.msra.mxu0 %v1186
        %1213 = vmatpush.msra.mxu0 %v1185
        %1214 = vmatpush.msra.mxu0 %v1184
        %1215 = vmatpush.msra.mxu0 %v1183
        %1216 = vmatpush.msra.mxu0 %v1182
        %1217 = vmatpush.msra.mxu0 %v1181
        %1218 = vmatpush.msra.mxu0 %v1180
        %1219 = vmatpush.msra.mxu0 %v1179
        %1220 = vmatmul.f32.gmra.mxu0 %v1175
        %v1221 = vpop.f32.mrf.mxu0
        %v1222 = vadd.f32 0.0, %v1221
        %1223 = vmatmul.f32.gmra.mxu0 %v1177
        %v1224 = vpop.f32.mrf.mxu0
        %v1225 = vadd.f32 0.0, %v1224
        %1226 = vdwg.mxu0
        %1227 = vmatpush.msra.mxu0 0.0
        %1228 = vmatpush.msra.mxu0 0.0
        %1229 = vmatpush.msra.mxu0 0.0
        %1230 = vmatpush.msra.mxu0 0.0
        %1231 = vmatpush.msra.mxu0 0.0
        %1232 = vmatpush.msra.mxu0 0.0
        %1233 = vmatpush.msra.mxu0 0.0
        %1234 = vmatpush.msra.mxu0 0.0
        %1235 = vmatpush.msra.mxu0 0.0
        %1236 = vmatpush.msra.mxu0 0.0
        %1237 = vmatpush.msra.mxu0 0.0
        %1238 = vmatpush.msra.mxu0 0.0
        %1239 = vmatpush.msra.mxu0 0.0
        %1240 = vmatpush.msra.mxu0 0.0
        %1241 = vmatpush.msra.mxu0 %v1196
        %1242 = vmatpush.msra.mxu0 %v1195
        %1243 = vmatmul.f32.gmra.mxu0 %v1199
        %v1244 = vpop.f32.mrf.mxu0
        %v1245 = vadd.f32 %v1222, %v1244
        %1246 = vmatmul.f32.gmra.mxu0 %v1202
        %v1247 = vpop.f32.mrf.mxu0
        %v1248 = vadd.f32 %v1225, %v1247
        %1249 = vdwg.mxu0
        %v1250 = vld [vmem:[%s6] sm:$0xff]
        %v1251 = vld [vmem:[%s6 + $0x8] sm:$0xff]
        %v1252 = vld [vmem:[%s6 + $0x10] sm:$0xff]
        %v1253 = vld [vmem:[%s6 + $0x18] sm:$0xff]
        %v1254 = vld [vmem:[%s6 + $0x20] sm:$0xff]
        %v1255 = vld [vmem:[%s6 + $0x28] sm:$0xff]
        %v1256 = vld [vmem:[%s6 + $0x30] sm:$0xff]
        %v1257 = vld [vmem:[%s6 + $0x38] sm:$0xff]
        %v1258 = vld [vmem:[%s6 + $0x40] sm:$0xff]
        %v1259 = vld [vmem:[%s6 + $0x48] sm:$0xff]
        %v1260 = vld [vmem:[%s6 + $0x50] sm:$0xff]
        %v1261 = vld [vmem:[%s6 + $0x58] sm:$0xff]
        %v1262 = vld [vmem:[%s6 + $0x60] sm:$0xff]
        %v1263 = vld [vmem:[%s6 + $0x68] sm:$0xff]
        %v1264 = vld [vmem:[%s6 + $0x70] sm:$0xff]
        %v1265 = vld [vmem:[%s6 + $0x78] sm:$0xff]
        %v1266 = vld [vmem:[%s6 + $0x80] sm:$0xff]
        %v1267 = vld [vmem:[%s6 + $0x88] sm:$0xff]
        %1268 = vmatpush.msra.mxu0 %v1265
        %1269 = vmatpush.msra.mxu0 %v1264
        %1270 = vmatpush.msra.mxu0 %v1263
        %1271 = vmatpush.msra.mxu0 %v1262
        %1272 = vmatpush.msra.mxu0 %v1261
        %1273 = vmatpush.msra.mxu0 %v1260
        %1274 = vmatpush.msra.mxu0 %v1259
        %1275 = vmatpush.msra.mxu0 %v1258
        %1276 = vmatpush.msra.mxu0 %v1257
        %1277 = vmatpush.msra.mxu0 %v1256
        %1278 = vmatpush.msra.mxu0 %v1255
        %1279 = vmatpush.msra.mxu0 %v1254
        %1280 = vmatpush.msra.mxu0 %v1253
        %1281 = vmatpush.msra.mxu0 %v1252
        %1282 = vmatpush.msra.mxu0 %v1251
        %1283 = vmatpush.msra.mxu0 %v1250
        %1284 = vmatmul.f32.gmra.mxu0 %v1175
        %v1285 = vpop.f32.mrf.mxu0
        %v1286 = vadd.f32 0.0, %v1285
        %1287 = vmatmul.f32.gmra.mxu0 %v1177
        %v1288 = vpop.f32.mrf.mxu0
        %v1289 = vadd.f32 0.0, %v1288
        %1290 = vdwg.mxu0
        %1291 = vmatpush.msra.mxu0 0.0
        %1292 = vmatpush.msra.mxu0 0.0
        %1293 = vmatpush.msra.mxu0 0.0
        %1294 = vmatpush.msra.mxu0 0.0
        %1295 = vmatpush.msra.mxu0 0.0
        %1296 = vmatpush.msra.mxu0 0.0
        %1297 = vmatpush.msra.mxu0 0.0
        %1298 = vmatpush.msra.mxu0 0.0
        %1299 = vmatpush.msra.mxu0 0.0
        %1300 = vmatpush.msra.mxu0 0.0
        %1301 = vmatpush.msra.mxu0 0.0
        %1302 = vmatpush.msra.mxu0 0.0
        %1303 = vmatpush.msra.mxu0 0.0
        %1304 = vmatpush.msra.mxu0 0.0
        %1305 = vmatpush.msra.mxu0 %v1267
        %1306 = vmatpush.msra.mxu0 %v1266
        %1307 = vmatmul.f32.gmra.mxu0 %v1199
        %v1308 = vpop.f32.mrf.mxu0
        %v1309 = vadd.f32 %v1286, %v1308
        %1310 = vmatmul.f32.gmra.mxu0 %v1202
        %v1311 = vpop.f32.mrf.mxu0
        %v1312 = vadd.f32 %v1289, %v1311
        %1313 = vdwg.mxu0
        %v1314 = vmax.f32 %v1245, %v1309
        %v1315 = vmax.f32 %v1248, %v1312
        %vm1316 = vcmask 588800
        %1317 = vst.msk [vmem:[#allocation2] sm:$0xff] %vm1316, %v1314
        %vm1318 = vcmask 584704
        %1319 = vst.msk [vmem:[#allocation2 + $0x8] sm:$0xf] %vm1318, %v1315
        %v1320 = vld [vmem:[#allocation2] sm:$0xff]
        %v1321 = vld [vmem:[#allocation7] sm:$0xff]
        %v1322 = vld [vmem:[#allocation7 + $0x8] sm:$0xff]
        %v1323 = vld [vmem:[#allocation7 + $0x10] sm:$0xff]
        %v1324 = vld [vmem:[#allocation7 + $0x18] sm:$0xff]
        %v1325 = vld [vmem:[#allocation7 + $0x20] sm:$0xff]
        %v1326 = vld [vmem:[#allocation7 + $0x28] sm:$0xff]
        %v1327 = vld [vmem:[#allocation7 + $0x30] sm:$0xff]
        %v1328 = vld [vmem:[#allocation7 + $0x38] sm:$0xff]
        %v1329 = vld [vmem:[#allocation7 + $0x40] sm:$0xff]
        %v1330 = vld [vmem:[#allocation2 + $0x1] sm:$0xff]
        %s1331 = scalar_lea.vmem [#allocation7], 72
        %v1332 = vld [vmem:[%s1331] sm:$0xff]
        %v1333 = vld [vmem:[%s1331 + $0x8] sm:$0xff]
        %v1334 = vld [vmem:[%s1331 + $0x10] sm:$0xff]
        %v1335 = vld [vmem:[%s1331 + $0x18] sm:$0xff]
        %v1336 = vld [vmem:[%s1331 + $0x20] sm:$0xff]
        %v1337 = vld [vmem:[%s1331 + $0x28] sm:$0xff]
        %v1338 = vld [vmem:[%s1331 + $0x30] sm:$0xff]
        %v1339 = vld [vmem:[%s1331 + $0x38] sm:$0xff]
        %v1340 = vld [vmem:[%s1331 + $0x40] sm:$0xff]
        %v1342 = vsel %vm1316, %v1330, 0
        %1344 = vmatpush.msra.mxu0 0.0
        %1345 = vmatpush.msra.mxu0 0.0
        %1346 = vmatpush.msra.mxu0 0.0
        %1347 = vmatpush.msra.mxu0 0.0
        %1348 = vmatpush.msra.mxu0 0.0
        %1349 = vmatpush.msra.mxu0 0.0
        %1350 = vmatpush.msra.mxu0 0.0
        %1351 = vmatpush.msra.mxu0 %v1340
        %1352 = vmatpush.msra.mxu0 %v1339
        %1353 = vmatpush.msra.mxu0 %v1338
        %1354 = vmatpush.msra.mxu0 %v1337
        %1355 = vmatpush.msra.mxu0 %v1336
        %1356 = vmatpush.msra.mxu0 %v1335
        %1357 = vmatpush.msra.mxu0 %v1334
        %1358 = vmatpush.msra.mxu0 %v1333
        %1359 = vmatpush.msra.mxu0 %v1332
        %1360 = vmatmul.f32.gmra.mxu0 %v1342
        %v1361 = vpop.f32.mrf.mxu0
        %v1362 = vadd.f32 0.0, %v1361
        %1363 = vdwg.mxu0
        %v1365 = vsel %vm1316, %v1320, 0
        %1367 = vmatpush.msra.mxu0 0.0
        %1368 = vmatpush.msra.mxu0 0.0
        %1369 = vmatpush.msra.mxu0 0.0
        %1370 = vmatpush.msra.mxu0 0.0
        %1371 = vmatpush.msra.mxu0 0.0
        %1372 = vmatpush.msra.mxu0 0.0
        %1373 = vmatpush.msra.mxu0 0.0
        %1374 = vmatpush.msra.mxu0 %v1329
        %1375 = vmatpush.msra.mxu0 %v1328
        %1376 = vmatpush.msra.mxu0 %v1327
        %1377 = vmatpush.msra.mxu0 %v1326
        %1378 = vmatpush.msra.mxu0 %v1325
        %1379 = vmatpush.msra.mxu0 %v1324
        %1380 = vmatpush.msra.mxu0 %v1323
        %1381 = vmatpush.msra.mxu0 %v1322
        %1382 = vmatpush.msra.mxu0 %v1321
        %1383 = vmatmul.f32.gmra.mxu0 %v1365
        %v1384 = vpop.f32.mrf.mxu0
        %v1385 = vadd.f32 %v1362, %v1384
        %1386 = vdwg.mxu0
        %v1387 = vld [vmem:[#allocation2 + $0x2] sm:$0xff]
        %s1388 = scalar_lea.vmem [#allocation7], 144
        %v1389 = vld [vmem:[%s1388] sm:$0xff]
        %v1390 = vld [vmem:[%s1388 + $0x8] sm:$0xff]
        %v1391 = vld [vmem:[%s1388 + $0x10] sm:$0xff]
        %v1392 = vld [vmem:[%s1388 + $0x18] sm:$0xff]
        %v1393 = vld [vmem:[%s1388 + $0x20] sm:$0xff]
        %v1394 = vld [vmem:[%s1388 + $0x28] sm:$0xff]
        %v1395 = vld [vmem:[%s1388 + $0x30] sm:$0xff]
        %v1396 = vld [vmem:[%s1388 + $0x38] sm:$0xff]
        %v1397 = vld [vmem:[%s1388 + $0x40] sm:$0xff]
        %v1399 = vsel %vm1316, %v1387, 0
        %1401 = vmatpush.msra.mxu0 0.0
        %1402 = vmatpush.msra.mxu0 0.0
        %1403 = vmatpush.msra.mxu0 0.0
        %1404 = vmatpush.msra.mxu0 0.0
        %1405 = vmatpush.msra.mxu0 0.0
        %1406 = vmatpush.msra.mxu0 0.0
        %1407 = vmatpush.msra.mxu0 0.0
        %1408 = vmatpush.msra.mxu0 %v1397
        %1409 = vmatpush.msra.mxu0 %v1396
        %1410 = vmatpush.msra.mxu0 %v1395
        %1411 = vmatpush.msra.mxu0 %v1394
        %1412 = vmatpush.msra.mxu0 %v1393
        %1413 = vmatpush.msra.mxu0 %v1392
        %1414 = vmatpush.msra.mxu0 %v1391
        %1415 = vmatpush.msra.mxu0 %v1390
        %1416 = vmatpush.msra.mxu0 %v1389
        %1417 = vmatmul.f32.gmra.mxu0 %v1399
        %v1418 = vpop.f32.mrf.mxu0
        %v1419 = vadd.f32 0.0, %v1418
        %1420 = vdwg.mxu0
        %v1421 = vadd.f32 %v1385, %v1419
        %v1422 = vld [vmem:[#allocation2 + $0x3] sm:$0xff]
        %s1423 = scalar_lea.vmem [#allocation7], 216
        %v1424 = vld [vmem:[%s1423] sm:$0xff]
        %v1425 = vld [vmem:[%s1423 + $0x8] sm:$0xff]
        %v1426 = vld [vmem:[%s1423 + $0x10] sm:$0xff]
        %v1427 = vld [vmem:[%s1423 + $0x18] sm:$0xff]
        %v1428 = vld [vmem:[%s1423 + $0x20] sm:$0xff]
        %v1429 = vld [vmem:[%s1423 + $0x28] sm:$0xff]
        %v1430 = vld [vmem:[%s1423 + $0x30] sm:$0xff]
        %v1431 = vld [vmem:[%s1423 + $0x38] sm:$0xff]
        %v1432 = vld [vmem:[%s1423 + $0x40] sm:$0xff]
        %v1434 = vsel %vm1316, %v1422, 0
        %1436 = vmatpush.msra.mxu0 0.0
        %1437 = vmatpush.msra.mxu0 0.0
        %1438 = vmatpush.msra.mxu0 0.0
        %1439 = vmatpush.msra.mxu0 0.0
        %1440 = vmatpush.msra.mxu0 0.0
        %1441 = vmatpush.msra.mxu0 0.0
        %1442 = vmatpush.msra.mxu0 0.0
        %1443 = vmatpush.msra.mxu0 %v1432
        %1444 = vmatpush.msra.mxu0 %v1431
        %1445 = vmatpush.msra.mxu0 %v1430
        %1446 = vmatpush.msra.mxu0 %v1429
        %1447 = vmatpush.msra.mxu0 %v1428
        %1448 = vmatpush.msra.mxu0 %v1427
        %1449 = vmatpush.msra.mxu0 %v1426
        %1450 = vmatpush.msra.mxu0 %v1425
        %1451 = vmatpush.msra.mxu0 %v1424
        %1452 = vmatmul.f32.gmra.mxu0 %v1434
        %v1453 = vpop.f32.mrf.mxu0
        %v1454 = vadd.f32 0.0, %v1453
        %1455 = vdwg.mxu0
        %v1456 = vadd.f32 %v1421, %v1454
        %v1457 = vld [vmem:[#allocation2 + $0x4] sm:$0xff]
        %s1458 = scalar_lea.vmem [#allocation7], 288
        %v1459 = vld [vmem:[%s1458] sm:$0xff]
        %v1460 = vld [vmem:[%s1458 + $0x8] sm:$0xff]
        %v1461 = vld [vmem:[%s1458 + $0x10] sm:$0xff]
        %v1462 = vld [vmem:[%s1458 + $0x18] sm:$0xff]
        %v1463 = vld [vmem:[%s1458 + $0x20] sm:$0xff]
        %v1464 = vld [vmem:[%s1458 + $0x28] sm:$0xff]
        %v1465 = vld [vmem:[%s1458 + $0x30] sm:$0xff]
        %v1466 = vld [vmem:[%s1458 + $0x38] sm:$0xff]
        %v1467 = vld [vmem:[%s1458 + $0x40] sm:$0xff]
        %v1469 = vsel %vm1316, %v1457, 0
        %1471 = vmatpush.msra.mxu0 0.0
        %1472 = vmatpush.msra.mxu0 0.0
        %1473 = vmatpush.msra.mxu0 0.0
        %1474 = vmatpush.msra.mxu0 0.0
        %1475 = vmatpush.msra.mxu0 0.0
        %1476 = vmatpush.msra.mxu0 0.0
        %1477 = vmatpush.msra.mxu0 0.0
        %1478 = vmatpush.msra.mxu0 %v1467
        %1479 = vmatpush.msra.mxu0 %v1466
        %1480 = vmatpush.msra.mxu0 %v1465
        %1481 = vmatpush.msra.mxu0 %v1464
        %1482 = vmatpush.msra.mxu0 %v1463
        %1483 = vmatpush.msra.mxu0 %v1462
        %1484 = vmatpush.msra.mxu0 %v1461
        %1485 = vmatpush.msra.mxu0 %v1460
        %1486 = vmatpush.msra.mxu0 %v1459
        %1487 = vmatmul.f32.gmra.mxu0 %v1469
        %v1488 = vpop.f32.mrf.mxu0
        %v1489 = vadd.f32 0.0, %v1488
        %1490 = vdwg.mxu0
        %v1491 = vadd.f32 %v1456, %v1489
        %v1492 = vld [vmem:[%s8] sm:$0x1]
        %v1494 = vperm.slane %v1492, 0
        %v1496 = vadd.f32 %v1491, %v1494
        %v1497 = vmax.f32 %v1496, 0.0
        %v1498 = vld [vmem:[%s9] sm:$0xf]
        %vm1499 = vcmask 64512
        %v1501 = vsel %vm1499, %v1498, 0
        %1503 = vmatpush.msra.mxu0 0.0
        %1504 = vmatpush.msra.mxu0 0.0
        %1505 = vmatpush.msra.mxu0 0.0
        %1506 = vmatpush.msra.mxu0 0.0
        %1507 = vmatpush.msra.mxu0 0.0
        %1508 = vmatpush.msra.mxu0 0.0
        %1509 = vmatpush.msra.mxu0 0.0
        %1510 = vmatpush.msra.mxu0 0.0
        %1511 = vmatpush.msra.mxu0 0.0
        %1512 = vmatpush.msra.mxu0 0.0
        %1513 = vmatpush.msra.mxu0 0.0
        %1514 = vmatpush.msra.mxu0 0.0
        %1515 = vmatpush.msra.mxu0 0.0
        %1516 = vmatpush.msra.mxu0 0.0
        %1517 = vmatpush.msra.mxu0 0.0
        %1518 = vmatpush.msra.mxu0 %v1497
        %1519 = vmatmul.f32.gmra.mxu0 %v1501
        %v1520 = vpop.f32.mrf.mxu0
        %v1521 = vadd.f32 0.0, %v1520
        %1522 = vdwg.mxu0
        %v1523 = vld [vmem:[%s10] sm:$0xf]
        %v1525 = vsel %vm1499, %v1523, 0
        %1527 = vmatpush.msra.mxu0 0.0
        %1528 = vmatpush.msra.mxu0 0.0
        %1529 = vmatpush.msra.mxu0 0.0
        %1530 = vmatpush.msra.mxu0 0.0
        %1531 = vmatpush.msra.mxu0 0.0
        %1532 = vmatpush.msra.mxu0 0.0
        %1533 = vmatpush.msra.mxu0 0.0
        %1534 = vmatpush.msra.mxu0 0.0
        %1535 = vmatpush.msra.mxu0 0.0
        %1536 = vmatpush.msra.mxu0 0.0
        %1537 = vmatpush.msra.mxu0 0.0
        %1538 = vmatpush.msra.mxu0 0.0
        %1539 = vmatpush.msra.mxu0 0.0
        %1540 = vmatpush.msra.mxu0 0.0
        %1541 = vmatpush.msra.mxu0 0.0
        %1542 = vmatpush.msra.mxu0 %v1497
        %1543 = vmatmul.f32.gmra.mxu0 %v1525
        %v1544 = vpop.f32.mrf.mxu0
        %v1545 = vadd.f32 0.0, %v1544
        %1546 = vdwg.mxu0
        %v1547 = vmax.f32 %v1521, %v1545
        %v1548 = vld [vmem:[%s11] sm:$0xff]
        %v1549 = vld [vmem:[%s11 + $0x8] sm:$0xff]
        %v1550 = vld [vmem:[%s11 + $0x10] sm:$0xff]
        %v1551 = vld [vmem:[%s11 + $0x18] sm:$0xff]
        %v1552 = vld [vmem:[%s11 + $0x20] sm:$0xff]
        %v1553 = vld [vmem:[%s11 + $0x28] sm:$0xff]
        %v1554 = vld [vmem:[%s11 + $0x30] sm:$0xff]
        %v1555 = vld [vmem:[%s11 + $0x38] sm:$0xff]
        %v1556 = vld [vmem:[%s11 + $0x40] sm:$0xff]
        %v1557 = vld [vmem:[%s11 + $0x48] sm:$0xff]
        %v1558 = vld [vmem:[%s11 + $0x50] sm:$0xff]
        %v1559 = vld [vmem:[%s11 + $0x58] sm:$0xff]
        %vm1560 = vcmask 785408
        %v1562 = vsel %vm1560, %v1547, 0
        %1564 = vmatpush.msra.mxu0 0.0
        %1565 = vmatpush.msra.mxu0 0.0
        %1566 = vmatpush.msra.mxu0 0.0
        %1567 = vmatpush.msra.mxu0 0.0
        %1568 = vmatpush.msra.mxu0 %v1559
        %1569 = vmatpush.msra.mxu0 %v1558
        %1570 = vmatpush.msra.mxu0 %v1557
        %1571 = vmatpush.msra.mxu0 %v1556
        %1572 = vmatpush.msra.mxu0 %v1555
        %1573 = vmatpush.msra.mxu0 %v1554
        %1574 = vmatpush.msra.mxu0 %v1553
        %1575 = vmatpush.msra.mxu0 %v1552
        %1576 = vmatpush.msra.mxu0 %v1551
        %1577 = vmatpush.msra.mxu0 %v1550
        %1578 = vmatpush.msra.mxu0 %v1549
        %1579 = vmatpush.msra.mxu0 %v1548
        %1580 = vmatmul.f32.gmra.mxu0 %v1562
        %v1581 = vpop.f32.mrf.mxu0
        %v1582 = vadd.f32 0.0, %v1581
        %1583 = vdwg.mxu0
        %v1584 = vld [vmem:[%s12] sm:$0xff]
        %v1585 = vld [vmem:[%s12 + $0x8] sm:$0xff]
        %v1586 = vld [vmem:[%s12 + $0x10] sm:$0xff]
        %v1587 = vld [vmem:[%s12 + $0x18] sm:$0xff]
        %v1588 = vld [vmem:[%s12 + $0x20] sm:$0xff]
        %v1589 = vld [vmem:[%s12 + $0x28] sm:$0xff]
        %v1590 = vld [vmem:[%s12 + $0x30] sm:$0xff]
        %v1591 = vld [vmem:[%s12 + $0x38] sm:$0xff]
        %v1592 = vld [vmem:[%s12 + $0x40] sm:$0xff]
        %v1593 = vld [vmem:[%s12 + $0x48] sm:$0xff]
        %v1594 = vld [vmem:[%s12 + $0x50] sm:$0xff]
        %v1595 = vld [vmem:[%s12 + $0x58] sm:$0xff]
        %1596 = vmatpush.msra.mxu0 0.0
        %1597 = vmatpush.msra.mxu0 0.0
        %1598 = vmatpush.msra.mxu0 0.0
        %1599 = vmatpush.msra.mxu0 0.0
        %1600 = vmatpush.msra.mxu0 %v1595
        %1601 = vmatpush.msra.mxu0 %v1594
        %1602 = vmatpush.msra.mxu0 %v1593
        %1603 = vmatpush.msra.mxu0 %v1592
        %1604 = vmatpush.msra.mxu0 %v1591
        %1605 = vmatpush.msra.mxu0 %v1590
        %1606 = vmatpush.msra.mxu0 %v1589
        %1607 = vmatpush.msra.mxu0 %v1588
        %1608 = vmatpush.msra.mxu0 %v1587
        %1609 = vmatpush.msra.mxu0 %v1586
        %1610 = vmatpush.msra.mxu0 %v1585
        %1611 = vmatpush.msra.mxu0 %v1584
        %1612 = vmatmul.f32.gmra.mxu0 %v1562
        %v1613 = vpop.f32.mrf.mxu0
        %v1614 = vadd.f32 0.0, %v1613
        %1615 = vdwg.mxu0
        %v1616 = vmax.f32 %v1582, %v1614
        %vm1617 = vcmask 388096
        %1618 = vst.msk [vmem:[#allocation3] sm:$0xf] %vm1617, %v1616
        %v1619 = vld [vmem:[#allocation3] sm:$0x1]
        %v1620 = vld [vmem:[%s13] sm:$0xff]
        %v1621 = vld [vmem:[%s13 + $0x8] sm:$0xff]
        %v1622 = vld [vmem:[%s13 + $0x10] sm:$0xff]
        %v1623 = vld [vmem:[%s13 + $0x18] sm:$0xff]
        %v1624 = vld [vmem:[%s13 + $0x20] sm:$0xff]
        %v1625 = vld [vmem:[%s13 + $0x28] sm:$0xff]
        %v1626 = vld [vmem:[#allocation3 + $0x1] sm:$0x1]
        %s1627 = scalar_lea.vmem %s13, 48
        %v1628 = vld [vmem:[%s1627] sm:$0xff]
        %v1629 = vld [vmem:[%s1627 + $0x8] sm:$0xff]
        %v1630 = vld [vmem:[%s1627 + $0x10] sm:$0xff]
        %v1631 = vld [vmem:[%s1627 + $0x18] sm:$0xff]
        %v1632 = vld [vmem:[%s1627 + $0x20] sm:$0xff]
        %v1633 = vld [vmem:[%s1627 + $0x28] sm:$0xff]
        %vm1634 = vcmask 392192
        %v1636 = vsel %vm1634, %v1626, 0
        %1638 = vmatpush.msra.mxu0 0.0
        %1639 = vmatpush.msra.mxu0 0.0
        %1640 = vmatpush.msra.mxu0 0.0
        %1641 = vmatpush.msra.mxu0 0.0
        %1642 = vmatpush.msra.mxu0 0.0
        %1643 = vmatpush.msra.mxu0 0.0
        %1644 = vmatpush.msra.mxu0 0.0
        %1645 = vmatpush.msra.mxu0 0.0
        %1646 = vmatpush.msra.mxu0 0.0
        %1647 = vmatpush.msra.mxu0 0.0
        %1648 = vmatpush.msra.mxu0 %v1633
        %1649 = vmatpush.msra.mxu0 %v1632
        %1650 = vmatpush.msra.mxu0 %v1631
        %1651 = vmatpush.msra.mxu0 %v1630
        %1652 = vmatpush.msra.mxu0 %v1629
        %1653 = vmatpush.msra.mxu0 %v1628
        %1654 = vmatmul.f32.gmra.mxu0 %v1636
        %v1655 = vpop.f32.mrf.mxu0
        %v1656 = vadd.f32 0.0, %v1655
        %1657 = vdwg.mxu0
        %v1659 = vsel %vm1634, %v1619, 0
        %1661 = vmatpush.msra.mxu0 0.0
        %1662 = vmatpush.msra.mxu0 0.0
        %1663 = vmatpush.msra.mxu0 0.0
        %1664 = vmatpush.msra.mxu0 0.0
        %1665 = vmatpush.msra.mxu0 0.0
        %1666 = vmatpush.msra.mxu0 0.0
        %1667 = vmatpush.msra.mxu0 0.0
        %1668 = vmatpush.msra.mxu0 0.0
        %1669 = vmatpush.msra.mxu0 0.0
        %1670 = vmatpush.msra.mxu0 0.0
        %1671 = vmatpush.msra.mxu0 %v1625
        %1672 = vmatpush.msra.mxu0 %v1624
        %1673 = vmatpush.msra.mxu0 %v1623
        %1674 = vmatpush.msra.mxu0 %v1622
        %1675 = vmatpush.msra.mxu0 %v1621
        %1676 = vmatpush.msra.mxu0 %v1620
        %1677 = vmatmul.f32.gmra.mxu0 %v1659
        %v1678 = vpop.f32.mrf.mxu0
        %v1679 = vadd.f32 %v1656, %v1678
        %1680 = vdwg.mxu0
        %v1681 = vld [vmem:[#allocation3 + $0x2] sm:$0x1]
        %s1682 = scalar_lea.vmem %s13, 96
        %v1683 = vld [vmem:[%s1682] sm:$0xff]
        %v1684 = vld [vmem:[%s1682 + $0x8] sm:$0xff]
        %v1685 = vld [vmem:[%s1682 + $0x10] sm:$0xff]
        %v1686 = vld [vmem:[%s1682 + $0x18] sm:$0xff]
        %v1687 = vld [vmem:[%s1682 + $0x20] sm:$0xff]
        %v1688 = vld [vmem:[%s1682 + $0x28] sm:$0xff]
        %v1690 = vsel %vm1634, %v1681, 0
        %1692 = vmatpush.msra.mxu0 0.0
        %1693 = vmatpush.msra.mxu0 0.0
        %1694 = vmatpush.msra.mxu0 0.0
        %1695 = vmatpush.msra.mxu0 0.0
        %1696 = vmatpush.msra.mxu0 0.0
        %1697 = vmatpush.msra.mxu0 0.0
        %1698 = vmatpush.msra.mxu0 0.0
        %1699 = vmatpush.msra.mxu0 0.0
        %1700 = vmatpush.msra.mxu0 0.0
        %1701 = vmatpush.msra.mxu0 0.0
        %1702 = vmatpush.msra.mxu0 %v1688
        %1703 = vmatpush.msra.mxu0 %v1687
        %1704 = vmatpush.msra.mxu0 %v1686
        %1705 = vmatpush.msra.mxu0 %v1685
        %1706 = vmatpush.msra.mxu0 %v1684
        %1707 = vmatpush.msra.mxu0 %v1683
        %1708 = vmatmul.f32.gmra.mxu0 %v1690
        %v1709 = vpop.f32.mrf.mxu0
        %v1710 = vadd.f32 0.0, %v1709
        %1711 = vdwg.mxu0
        %v1712 = vadd.f32 %v1679, %v1710
        %v1713 = vld [vmem:[#allocation3 + $0x3] sm:$0x1]
        %s1714 = scalar_lea.vmem %s13, 144
        %v1715 = vld [vmem:[%s1714] sm:$0xff]
        %v1716 = vld [vmem:[%s1714 + $0x8] sm:$0xff]
        %v1717 = vld [vmem:[%s1714 + $0x10] sm:$0xff]
        %v1718 = vld [vmem:[%s1714 + $0x18] sm:$0xff]
        %v1719 = vld [vmem:[%s1714 + $0x20] sm:$0xff]
        %v1720 = vld [vmem:[%s1714 + $0x28] sm:$0xff]
        %v1722 = vsel %vm1634, %v1713, 0
        %1724 = vmatpush.msra.mxu0 0.0
        %1725 = vmatpush.msra.mxu0 0.0
        %1726 = vmatpush.msra.mxu0 0.0
        %1727 = vmatpush.msra.mxu0 0.0
        %1728 = vmatpush.msra.mxu0 0.0
        %1729 = vmatpush.msra.mxu0 0.0
        %1730 = vmatpush.msra.mxu0 0.0
        %1731 = vmatpush.msra.mxu0 0.0
        %1732 = vmatpush.msra.mxu0 0.0
        %1733 = vmatpush.msra.mxu0 0.0
        %1734 = vmatpush.msra.mxu0 %v1720
        %1735 = vmatpush.msra.mxu0 %v1719
        %1736 = vmatpush.msra.mxu0 %v1718
        %1737 = vmatpush.msra.mxu0 %v1717
        %1738 = vmatpush.msra.mxu0 %v1716
        %1739 = vmatpush.msra.mxu0 %v1715
        %1740 = vmatmul.f32.gmra.mxu0 %v1722
        %v1741 = vpop.f32.mrf.mxu0
        %v1742 = vadd.f32 0.0, %v1741
        %1743 = vdwg.mxu0
        %v1744 = vadd.f32 %v1712, %v1742
        %v1745 = vld [vmem:[%s14] sm:$0x1]
        %v1746 = vadd.f32 %v1744, %v1745
        %v1747 = vmax.f32 %v1746, 0.0
        %v1748 = vld [vmem:[%s15] sm:$0xff]
        %v1749 = vld [vmem:[%s15 + $0x8] sm:$0xff]
        %v1750 = vld [vmem:[%s15 + $0x10] sm:$0xff]
        %v1751 = vld [vmem:[%s15 + $0x18] sm:$0xff]
        %v1752 = vld [vmem:[%s15 + $0x20] sm:$0xff]
        %v1753 = vld [vmem:[%s15 + $0x28] sm:$0xff]
        %v1754 = vld [vmem:[%s15 + $0x30] sm:$0xff]
        %v1755 = vld [vmem:[%s15 + $0x38] sm:$0xff]
        %v1756 = vld [vmem:[%s15 + $0x40] sm:$0xff]
        %v1757 = vld [vmem:[%s15 + $0x48] sm:$0xff]
        %v1758 = vld [vmem:[%s15 + $0x50] sm:$0xff]
        %v1759 = vld [vmem:[%s15 + $0x58] sm:$0xff]
        %v1760 = vld [vmem:[%s15 + $0x60] sm:$0xff]
        %v1761 = vld [vmem:[%s15 + $0x68] sm:$0xff]
        %v1762 = vld [vmem:[%s15 + $0x70] sm:$0xff]
        %v1763 = vld [vmem:[%s16] sm:$0x1]
        %vm1764 = vcmask 982016
        %v1766 = vsel %vm1764, %v1747, 0
        %1768 = vmatpush.msra.mxu0 0.0
        %1769 = vmatpush.msra.mxu0 %v1762
        %1770 = vmatpush.msra.mxu0 %v1761
        %1771 = vmatpush.msra.mxu0 %v1760
        %1772 = vmatpush.msra.mxu0 %v1759
        %1773 = vmatpush.msra.mxu0 %v1758
        %1774 = vmatpush.msra.mxu0 %v1757
        %1775 = vmatpush.msra.mxu0 %v1756
        %1776 = vmatpush.msra.mxu0 %v1755
        %1777 = vmatpush.msra.mxu0 %v1754
        %1778 = vmatpush.msra.mxu0 %v1753
        %1779 = vmatpush.msra.mxu0 %v1752
        %1780 = vmatpush.msra.mxu0 %v1751
        %1781 = vmatpush.msra.mxu0 %v1750
        %1782 = vmatpush.msra.mxu0 %v1749
        %1783 = vmatpush.msra.mxu0 %v1748
        %1784 = vmatmul.f32.gmra.mxu0 %v1766
        %v1785 = vpop.f32.mrf.mxu0
        %v1786 = vadd.f32 %v1763, %v1785
        %1787 = vdwg.mxu0
        %v1788 = vmax.f32 %v1786, 0.0
        %v1789 = vld [vmem:[%s17] sm:$0xff]
        %v1790 = vld [vmem:[%s17 + $0x8] sm:$0xff]
        %v1791 = vld [vmem:[%s17 + $0x10] sm:$0xff]
        %v1792 = vld [vmem:[%s17 + $0x18] sm:$0xff]
        %v1793 = vld [vmem:[%s17 + $0x20] sm:$0xff]
        %v1794 = vld [vmem:[%s17 + $0x28] sm:$0xff]
        %v1795 = vld [vmem:[%s17 + $0x30] sm:$0xff]
        %v1796 = vld [vmem:[%s17 + $0x38] sm:$0xf]
        %v1797 = vld [vmem:[%s18] sm:$0x1]
        %vm1798 = vcmask 490496
        %v1800 = vsel %vm1798, %v1788, 0
        %v1803 = vsel %vm667, %v1796, 0
        %1805 = vmatpush.msra.mxu0 0.0
        %1806 = vmatpush.msra.mxu0 0.0
        %1807 = vmatpush.msra.mxu0 0.0
        %1808 = vmatpush.msra.mxu0 0.0
        %1809 = vmatpush.msra.mxu0 0.0
        %1810 = vmatpush.msra.mxu0 0.0
        %1811 = vmatpush.msra.mxu0 0.0
        %1812 = vmatpush.msra.mxu0 0.0
        %1813 = vmatpush.msra.mxu0 %v1803
        %1814 = vmatpush.msra.mxu0 %v1795
        %1815 = vmatpush.msra.mxu0 %v1794
        %1816 = vmatpush.msra.mxu0 %v1793
        %1817 = vmatpush.msra.mxu0 %v1792
        %1818 = vmatpush.msra.mxu0 %v1791
        %1819 = vmatpush.msra.mxu0 %v1790
        %1820 = vmatpush.msra.mxu0 %v1789
        %1821 = vmatmul.f32.gmra.mxu0 %v1800
        %v1822 = vpop.f32.mrf.mxu0
        %v1823 = vadd.f32 %v1797, %v1822
        %1824 = vdwg.mxu0
        %vm1825 = vcmask 73728
        %1826 = vst.msk [vmem:[%s628] sm:$0x1] %vm1825, %v1823
        %s1827 = sand.u32 %s447, 1
        %s1828 = scalar_lea.sflag [#allocation6], %s1827
        %s1829 = sand.u32 %s447, 1
        %s1830 = scalar_lea.vmem [#allocation9], %s1829
        // Predicated region
        $region105: #{network_forward.1} parent=95 // pred_check
          %p1831 = pneg %p457
        $region106: #{network_forward.1} parent=95 // pred_check_branch
          %1833 = sbr.rel (%p1831) target = $region108
        $region107: #{network_forward.1} parent=95 // pred_region
          %1835 = vsyncadd %s1828, 0
          %s1836 = scalar_lea.hbm %s19, %s35
          %s1838 = sshll.u32 %s1830, 4
          %s1839 = int_to_ptr.vmem [resolvable:$true] %s1838
          %s1840 = sshll.u32 %s1836, 4
          %s1841 = int_to_ptr.hbm [resolvable:$true] %s1840
          %1843 = dma.vmem_to_hbm [thread:$0]  %s1839, 16, %s1841, %s1828
        $region108: #{network_forward.1} parent=95 // pred_fallthru
          _
      $region96: #{network_forward.1} parent=5 // pred_fallthru
        _
      %p1844 = scmp.le.s32.totalorder 2, %s30
      // Predicated region
      $region109: #{network_forward.1} parent=5 // pred_check
        %p1845 = pneg %p1844
      $region110: #{network_forward.1} parent=5 // pred_check_branch
        %1847 = sbr.rel (%p1845) target = $region112
      $region111: #{network_forward.1} parent=5 // pred_region
        %s1848 = ssub.s32 %s30, 2
        // Predicated region
        $region113: #{network_forward.1} parent=111 // pred_check
          %p1849 = pneg %p463
        $region114: #{network_forward.1} parent=111 // pred_check_branch
          %1851 = sbr.rel (%p1849) target = $region116
        $region115: #{network_forward.1} parent=111 // pred_region
          %s1852 = sand.u32 %s448, 1
          %s1853 = scalar_lea.sflag [#allocation6], %s1852
          %s1854 = sand.u32 %s448, 1
          %s1855 = scalar_lea.vmem [#allocation9], %s1854
          %1857 = dma.done %s1853, 16
        $region116: #{network_forward.1} parent=111 // pred_fallthru
          _
      $region112: #{network_forward.1} parent=5 // pred_fallthru
        _
    $region6: #{network_forward.1} parent=1 // loop_footer
      %s34 = sadd.s32 1, %s30
    $region7: #{network_forward.1} parent=1 // loop_footer_branch
      %29 = sbr.rel target = $region3
    $region8: #{network_forward.1} parent=1 // loop_exit
      _
    %1858 = vsyncpa [#allocation5], 1
    %s1859 = scalar_lea.sflag [#allocation5], 1
    %1860 = vsyncpa %s1859, 1
    %1861 = vsyncpa [#allocation8], 1
    %1862 = vsyncpa [#allocation6], 1
    %s1863 = scalar_lea.sflag [#allocation6], 1
    %1864 = vsyncpa %s1863, 1

</llo_original>
